<compile_context>
chip_gen: v7x
topology: tpu7x:2x2x1
jax: 0.10.0
libtpu: 0.0.40
codegen_flags: <defaults>
</compile_context>

<pallas_src>
import jax
import jax.numpy as jnp
import numpy as np
from jax import lax
from jax.experimental import pallas as pl
from jax.experimental.pallas import tpu as pltpu

EPS = 1e-5
CPAD = 128   # lane width of the matmul N dim / per-channel stats (one full vreg lane tile)


# --------------------------------------------------------------------------
# small helpers
# --------------------------------------------------------------------------
def _round_up(x, m):
    return ((x + m - 1) // m) * m


def _vmem_limit_bytes():
    """Generation-aware VMEM limit: half of physical, capped at 64 MiB."""
    try:
        cap = int(pltpu.get_tpu_info().vmem_capacity_bytes)
    except Exception:
        cap = 64 * 1024 * 1024
    return max(16 * 1024 * 1024, min(cap // 2, 64 * 1024 * 1024))


def _pick_batch_block(n, rows_per_image, vmem_budget_bytes):
    """Batch elements per grid step: smallest divisor of n giving M >= 128 rows, VMEM permitting."""
    # Rough per-row VMEM in the stage-2 step (the larger one): bf16 im2col slab (128 lanes)
    # + f32 matmul accumulator (128 lanes) + double-buffered, lane-padded in/out blocks.
    per_row_bytes = 2048
    row_cap = max(rows_per_image, vmem_budget_bytes // per_row_bytes)
    nb = 1
    for d in range(1, n + 1):
        if n % d != 0:
            continue
        if d * rows_per_image > row_cap:
            break
        nb = d
        if d * rows_per_image >= 128:      # enough M rows to fill the MXU; keep grid steps
            break
    return nb


# --------------------------------------------------------------------------
# in-kernel helpers
# --------------------------------------------------------------------------
def _im2col_conv3x3(x_bf16, w_ref, b_ref):
    """3x3 'SAME' conv of x:(NB, H, W, C) bf16 as ONE im2col matmul on the MXU.

    w_ref: (KP, CPAD) bf16, rows packed in (dx, dy, cin) order with zero rows past 9*C.
    Returns (NB*H*W, CPAD) f32 = conv + bias.
    """
    nb, h, w, c = x_bf16.shape
    kp = w_ref.shape[0]
    # 1-pixel zero halo via cheap border concatenation (no full-buffer zero fill).
    zr = jnp.zeros((nb, 1, w, c), x_bf16.dtype)
    p = jnp.concatenate([zr, x_bf16, zr], axis=1)                     # (NB, H+2, W,   C)
    zc = jnp.zeros((nb, h + 2, 1, c), x_bf16.dtype)
    p = jnp.concatenate([zc, p, zc], axis=2)                          # (NB, H+2, W+2, C)
    # im2col in bf16: 3 row shifts packed on lanes, then 3 col shifts -> (NB, H, W, 9C)
    rows = jnp.concatenate([p[:, dy:dy + h] for dy in range(3)], axis=-1)
    slab = jnp.concatenate([rows[:, :, dx:dx + w] for dx in range(3)], axis=-1)
    k = 9 * c
    if kp > k:                                                        # lane-align K
        slab = jnp.concatenate(
            [slab, jnp.zeros((nb, h, w, kp - k), slab.dtype)], axis=-1)
    slab2d = slab.reshape(nb * h * w, kp)                             # bf16 (M, KP)
    y = jnp.dot(slab2d, w_ref[...], preferred_element_type=jnp.float32)
    return y + b_ref[...]                                             # (M, CPAD) f32


def _tile_stats(y):
    """Per-tile BatchNorm partials over rows: stacked (mean, sum of squared deviations)."""
    mean = jnp.mean(y, axis=0, keepdims=True)
    d = y - mean
    return jnp.concatenate([mean, jnp.sum(d * d, axis=0, keepdims=True)], axis=0)  # (2, CPAD)


# --------------------------------------------------------------------------
# stage kernels (grid over batch blocks; nb images per step)
# --------------------------------------------------------------------------
def _stage1_kernel(x_ref, w_ref, b_ref, y_ref, st_ref):
    # x_ref: (NB, H2, W2, 4*Cin) bf16 -- minor dim packs (py, px, cin) of the 2x2 pool window.
    nb, h2, w2, c4 = x_ref.shape
    cin = c4 // 4
    cmid = y_ref.shape[-1]

    x = x_ref[...]
    pool = jnp.maximum(
        jnp.maximum(x[..., 0 * cin:1 * cin], x[..., 1 * cin:2 * cin]),
        jnp.maximum(x[..., 2 * cin:3 * cin], x[..., 3 * cin:4 * cin]))   # (NB, H2, W2, Cin) bf16

    y = _im2col_conv3x3(pool, w_ref, b_ref)                              # (M, CPAD) f32
    st_ref[...] = _tile_stats(y).reshape(1, 2, CPAD)
    y4 = y.reshape(nb, h2, w2, CPAD)
    y_ref[...] = y4[..., :cmid].astype(y_ref.dtype)                      # compact bf16 store


def _stage2_kernel(y1_ref, sc_ref, sh_ref, w_ref, b_ref, y2_ref, st_ref):
    nb, h2, w2, cmid = y1_ref.shape
    cout = y2_ref.shape[-1]
    sc = sc_ref[...].reshape(1, 1, 1, cmid)
    sh = sh_ref[...].reshape(1, 1, 1, cmid)
    # fused BN1 + ReLU (f32 math), cast to bf16 right away so the im2col slab is bf16
    h1 = jnp.maximum(y1_ref[...].astype(jnp.float32) * sc + sh, 0.0).astype(jnp.bfloat16)

    y = _im2col_conv3x3(h1, w_ref, b_ref)                                # (M, CPAD) f32
    st_ref[...] = _tile_stats(y).reshape(1, 2, CPAD)
    y4 = y.reshape(nb, h2, w2, CPAD)
    y2_ref[...] = y4[..., :cout].astype(y2_ref.dtype)                    # compact bf16 store


# --------------------------------------------------------------------------
# wrapper-side packing / BN finalize
# --------------------------------------------------------------------------
def _pack_conv_weight(w, k_pad, cout_pad):
    """(3,3,cin,cout) HWIO -> (k_pad, cout_pad) bf16, row order (dx, dy, cin), zero-padded."""
    kh, kw, cin, cout = w.shape
    wp = jnp.transpose(w.astype(jnp.float32), (1, 0, 2, 3)).reshape(kh * kw * cin, cout)
    out = jnp.zeros((k_pad, cout_pad), jnp.float32)
    out = out.at[:kh * kw * cin, :cout].set(wp)
    return out.astype(jnp.bfloat16)


def _pad_channel_vec(v, cpad):
    v = v.reshape(-1).astype(jnp.float32)
    return jnp.zeros((1, cpad), jnp.float32).at[0, :v.shape[0]].set(v)


def _bn_scale_shift(stats, gamma_p, beta_p, tile_count):
    """Merge per-tile (mean, M2) into a fused per-channel scale/shift (parallel Welford merge).

    Equal tile sizes are guaranteed because the batch block divides N.
    Tiny per-channel math between pallas_calls (fused XLA ops inside the same jit).
    """
    means = stats[:, 0, :]                                    # (T, CPAD)
    m2s = stats[:, 1, :]
    ntiles = stats.shape[0]
    mean = jnp.mean(means, axis=0)
    m2 = jnp.sum(m2s, axis=0) + tile_count * jnp.sum((means - mean[None, :]) ** 2, axis=0)
    var = jnp.maximum(m2 / (ntiles * tile_count), 0.0)        # biased batch variance
    scale = gamma_p.reshape(-1) * lax.rsqrt(var + EPS)
    shift = beta_p.reshape(-1) - mean * scale
    return scale.reshape(1, -1), shift.reshape(1, -1)


def down_forward(x_nchw, params):
    """Down.forward: (N, Cin, H, W) -> (N, Cout, H/2, W/2)."""
    n, cin, h, w = x_nchw.shape
    assert h % 2 == 0 and w % 2 == 0, "MaxPool2d(2) path assumes even H and W"
    h2, w2 = h // 2, w // 2
    cmid = params["w1"].shape[3]
    cout = params["w2"].shape[3]
    assert cmid <= CPAD and cout <= CPAD

    k1p = max(CPAD, _round_up(9 * cin, CPAD))     # compact K for conv1, lane aligned
    k2p = max(CPAD, _round_up(9 * cmid, CPAD))    # compact K for conv2 (128 for cmid <= 14)

    vmem_limit = _vmem_limit_bytes()
    nb = _pick_batch_block(n, h2 * w2, vmem_limit // 2)
    grid = (n // nb,)

    # NCHW -> (N, H2, W2, 2*2*Cin) bf16: pool window (py, px, c) packed into the minor dim so
    # the stage-1 block DMA is a contiguous 4-D block (max commutes with the bf16 rounding).
    x_nhwc = jnp.transpose(x_nchw, (0, 2, 3, 1))
    x_pre = (x_nhwc.reshape(n, h2, 2, w2, 2, cin)
                   .transpose(0, 1, 3, 2, 4, 5)
                   .reshape(n, h2, w2, 4 * cin)
                   .astype(jnp.bfloat16))

    # Pre-pack weights (compact-K im2col layout, bf16) and lane-pad per-channel params.
    w1p = _pack_conv_weight(params["w1"], k1p, CPAD)          # (128, 128) bf16
    b1p = _pad_channel_vec(params["b1"], CPAD)
    g1p = _pad_channel_vec(params["g1"], CPAD)
    be1p = _pad_channel_vec(params["be1"], CPAD)
    w2p = _pack_conv_weight(params["w2"], k2p, CPAD)          # (128, 128) bf16 (was 1152x128)
    b2p = _pad_channel_vec(params["b2"], CPAD)
    g2p = _pad_channel_vec(params["g2"], CPAD)
    be2p = _pad_channel_vec(params["be2"], CPAD)

    cparams = pltpu.CompilerParams(dimension_semantics=("parallel",),
                                   vmem_limit_bytes=vmem_limit)

    # ---- stage 1: maxpool + conv1(+bias) + per-tile BN1 partial stats ----
    y1, st1 = pl.pallas_call(
        _stage1_kernel,
        grid=grid,
        in_specs=[
            pl.BlockSpec((nb, h2, w2, 4 * cin), lambda i: (i, 0, 0, 0)),
            pl.BlockSpec((k1p, CPAD), lambda i: (0, 0)),
            pl.BlockSpec((1, CPAD), lambda i: (0, 0)),
        ],
        out_specs=(
            pl.BlockSpec((nb, h2, w2, cmid), lambda i: (i, 0, 0, 0)),
            pl.BlockSpec((1, 2, CPAD), lambda i: (i, 0, 0)),
        ),
        out_shape=(
            jax.ShapeDtypeStruct((n, h2, w2, cmid), jnp.bfloat16),    # compact bf16 intermediate
            jax.ShapeDtypeStruct((n // nb, 2, CPAD), jnp.float32),
        ),
        compiler_params=cparams,
    )(x_pre, w1p, b1p)

    sc1, sh1 = _bn_scale_shift(st1, g1p, be1p, tile_count=nb * h2 * w2)
    sc1c, sh1c = sc1[:, :cmid], sh1[:, :cmid]

    # ---- stage 2: fused BN1+ReLU + conv2(+bias) + per-tile BN2 partial stats ----
    y2, st2 = pl.pallas_call(
        _stage2_kernel,
        grid=grid,
        in_specs=[
            pl.BlockSpec((nb, h2, w2, cmid), lambda i: (i, 0, 0, 0)),
            pl.BlockSpec((1, cmid), lambda i: (0, 0)),
            pl.BlockSpec((1, cmid), lambda i: (0, 0)),
            pl.BlockSpec((k2p, CPAD), lambda i: (0, 0)),
            pl.BlockSpec((1, CPAD), lambda i: (0, 0)),
        ],
        out_specs=(
            pl.BlockSpec((nb, h2, w2, cout), lambda i: (i, 0, 0, 0)),
            pl.BlockSpec((1, 2, CPAD), lambda i: (i, 0, 0)),
        ),
        out_shape=(
            jax.ShapeDtypeStruct((n, h2, w2, cout), jnp.bfloat16),    # compact bf16 intermediate
            jax.ShapeDtypeStruct((n // nb, 2, CPAD), jnp.float32),
        ),
        compiler_params=cparams,
    )(y1, sc1c, sh1c, w2p, b2p)

    sc2, sh2 = _bn_scale_shift(st2, g2p, be2p, tile_count=nb * h2 * w2)

    # ---- finalize: fused BN2 + ReLU + NCHW transpose as one XLA fusion on compact y2 ----
    out = jnp.maximum(
        y2.astype(jnp.float32) * sc2[:, :cout].reshape(1, 1, 1, cout)
        + sh2[:, :cout].reshape(1, 1, 1, cout), 0.0)
    return jnp.transpose(out, (0, 3, 1, 2))                            # (N, Cout, H2, W2) f32


# ------------------------ pure-JAX reference ------------------------
def ref_down_nchw(x_nchw, p):
    x = jnp.transpose(x_nchw, (0, 2, 3, 1))
    pooled = lax.reduce_window(x, -jnp.inf, lax.max, (1, 2, 2, 1), (1, 2, 2, 1), "VALID")

    def block(hh, w, b, g, be):
        y = lax.conv_general_dilated(hh, w, (1, 1), "SAME",
                                     dimension_numbers=("NHWC", "HWIO", "NHWC"))
        y = y + b.reshape(1, 1, 1, -1)
        mean = y.mean(axis=(0, 1, 2))
        var = y.var(axis=(0, 1, 2))
        y = (y - mean) / jnp.sqrt(var + EPS) * g.reshape(1, 1, 1, -1) + be.reshape(1, 1, 1, -1)
        return jnp.maximum(y, 0.0)

    hh = block(pooled, p["w1"], p["b1"], p["g1"], p["be1"])
    hh = block(hh, p["w2"], p["b2"], p["g2"], p["be2"])
    return jnp.transpose(hh, (0, 3, 1, 2))


if __name__ == "__main__":
    key = jax.random.PRNGKey(0)
    N, Cin, Cout, H, W = 2, 4, 8, 16, 16        # Down(in_channels=4, out_channels=8)
    Cmid = Cout                                  # DoubleConv default: mid = out
    k = jax.random.split(key, 5)

    x = jax.random.normal(k[0], (N, Cin, H, W), jnp.float32)
    params = dict(
        w1=jax.random.normal(k[1], (3, 3, Cin, Cmid), jnp.float32) * 0.1,   # HWIO
        b1=jax.random.normal(k[2], (1, Cmid), jnp.float32) * 0.05,
        g1=jnp.ones((1, Cmid), jnp.float32),
        be1=jnp.zeros((1, Cmid), jnp.float32),
        w2=jax.random.normal(k[3], (3, 3, Cmid, Cout), jnp.float32) * 0.1,  # HWIO
        b2=jax.random.normal(k[4], (1, Cout), jnp.float32) * 0.05,
        g2=jnp.ones((1, Cout), jnp.float32),
        be2=jnp.zeros((1, Cout), jnp.float32),
    )

    out = jax.jit(down_forward)(x, params)
    out = jax.block_until_ready(out)

    assert out.shape == (N, Cout, H // 2, W // 2), out.shape
    ref = ref_down_nchw(x, params)
    # bf16 MXU inputs + bf16 inter-stage intermediates (f32 accumulation) -> relaxed tolerance
    # vs. the pure-f32 reference; this is the deliberate precision/bandwidth trade.
    np.testing.assert_allclose(np.asarray(out), np.asarray(ref), rtol=5e-2, atol=5e-2)
    print("KERNEL_OK")
</pallas_src>

<mosaic_0001>
module attributes {stable_mosaic.version = 11 : i64} {
  func.func @_stage1_kernel(%arg0: i32, %arg1: memref<2x8x8x16xbf16, #tpu.memory_space<vmem>>, %arg2: memref<128x128xbf16, #tpu.memory_space<vmem>>, %arg3: memref<1x128xf32, #tpu.memory_space<vmem>>, %arg4: memref<2x8x8x8xbf16, #tpu.memory_space<vmem>>, %arg5: memref<1x2x128xf32, #tpu.memory_space<vmem>>) attributes {dimension_semantics = [#tpu.dimension_semantics<parallel>], iteration_bounds = array<i64: 1>, scalar_prefetch = 0 : i64, scratch_operands = 0 : i64, tpu.core_type = #tpu.core_type<tc>, window_params = [{transform_indices = @transform_0, window_bounds = array<i64: 2, 8, 8, 16>}, {pipeline_mode = #tpu.pipeline_mode<synchronous>, transform_indices = @transform_1, window_bounds = array<i64: 128, 128>}, {pipeline_mode = #tpu.pipeline_mode<synchronous>, transform_indices = @transform_2, window_bounds = array<i64: 1, 128>}, {transform_indices = @transform_3, window_bounds = array<i64: 2, 8, 8, 8>}, {transform_indices = @transform_4, window_bounds = array<i64: 1, 2, 128>}]} {
    %c0 = arith.constant 0 : index
    %c0_0 = arith.constant 0 : index
    %c0_1 = arith.constant 0 : index
    %c0_2 = arith.constant 0 : index
    %0 = vector.load %arg1[%c0, %c0_0, %c0_1, %c0_2] : memref<2x8x8x16xbf16, #tpu.memory_space<vmem>>, vector<2x8x8x16xbf16>
    %1 = vector.extract_strided_slice %0 {offsets = [0, 0, 0, 0], sizes = [2, 8, 8, 4], strides = [1, 1, 1, 1]} : vector<2x8x8x16xbf16> to vector<2x8x8x4xbf16>
    %2 = vector.extract_strided_slice %0 {offsets = [0, 0, 0, 4], sizes = [2, 8, 8, 4], strides = [1, 1, 1, 1]} : vector<2x8x8x16xbf16> to vector<2x8x8x4xbf16>
    %3 = arith.maximumf %1, %2 : vector<2x8x8x4xbf16>
    %4 = vector.extract_strided_slice %0 {offsets = [0, 0, 0, 8], sizes = [2, 8, 8, 4], strides = [1, 1, 1, 1]} : vector<2x8x8x16xbf16> to vector<2x8x8x4xbf16>
    %5 = vector.extract_strided_slice %0 {offsets = [0, 0, 0, 12], sizes = [2, 8, 8, 4], strides = [1, 1, 1, 1]} : vector<2x8x8x16xbf16> to vector<2x8x8x4xbf16>
    %6 = arith.maximumf %4, %5 : vector<2x8x8x4xbf16>
    %7 = arith.maximumf %3, %6 : vector<2x8x8x4xbf16>
    %cst = arith.constant 0.000000e+00 : bf16
    %8 = vector.broadcast %cst : bf16 to vector<2x1x8x4xbf16>
    %9 = tpu.concatenate %8, %7, %8 in 1 : vector<2x1x8x4xbf16>, vector<2x8x8x4xbf16>, vector<2x1x8x4xbf16> -> vector<2x10x8x4xbf16>
    %cst_3 = arith.constant 0.000000e+00 : bf16
    %10 = vector.broadcast %cst_3 : bf16 to vector<2x10x1x4xbf16>
    %11 = tpu.concatenate %10, %9, %10 in 2 : vector<2x10x1x4xbf16>, vector<2x10x8x4xbf16>, vector<2x10x1x4xbf16> -> vector<2x10x10x4xbf16>
    %12 = vector.extract_strided_slice %11 {offsets = [0, 0, 0, 0], sizes = [2, 8, 10, 4], strides = [1, 1, 1, 1]} : vector<2x10x10x4xbf16> to vector<2x8x10x4xbf16>
    %13 = vector.extract_strided_slice %11 {offsets = [0, 1, 0, 0], sizes = [2, 8, 10, 4], strides = [1, 1, 1, 1]} : vector<2x10x10x4xbf16> to vector<2x8x10x4xbf16>
    %14 = vector.extract_strided_slice %11 {offsets = [0, 2, 0, 0], sizes = [2, 8, 10, 4], strides = [1, 1, 1, 1]} : vector<2x10x10x4xbf16> to vector<2x8x10x4xbf16>
    %15 = tpu.concatenate %12, %13, %14 in 3 : vector<2x8x10x4xbf16>, vector<2x8x10x4xbf16>, vector<2x8x10x4xbf16> -> vector<2x8x10x12xbf16>
    %16 = vector.extract_strided_slice %15 {offsets = [0, 0, 0, 0], sizes = [2, 8, 8, 12], strides = [1, 1, 1, 1]} : vector<2x8x10x12xbf16> to vector<2x8x8x12xbf16>
    %17 = vector.extract_strided_slice %15 {offsets = [0, 0, 1, 0], sizes = [2, 8, 8, 12], strides = [1, 1, 1, 1]} : vector<2x8x10x12xbf16> to vector<2x8x8x12xbf16>
    %18 = vector.extract_strided_slice %15 {offsets = [0, 0, 2, 0], sizes = [2, 8, 8, 12], strides = [1, 1, 1, 1]} : vector<2x8x10x12xbf16> to vector<2x8x8x12xbf16>
    %19 = tpu.concatenate %16, %17, %18 in 3 : vector<2x8x8x12xbf16>, vector<2x8x8x12xbf16>, vector<2x8x8x12xbf16> -> vector<2x8x8x36xbf16>
    %cst_4 = arith.constant 0.000000e+00 : bf16
    %20 = vector.broadcast %cst_4 : bf16 to vector<2x8x8x92xbf16>
    %21 = tpu.concatenate %19, %20 in 3 : vector<2x8x8x36xbf16>, vector<2x8x8x92xbf16> -> vector<2x8x8x128xbf16>
    %22 = vector.shape_cast %21 : vector<2x8x8x128xbf16> to vector<128x128xbf16>
    %c0_5 = arith.constant 0 : index
    %c0_6 = arith.constant 0 : index
    %23 = vector.load %arg2[%c0_5, %c0_6] : memref<128x128xbf16, #tpu.memory_space<vmem>>, vector<128x128xbf16>
    %cst_7 = arith.constant dense<0.000000e+00> : vector<128x128xf32>
    %24 = tpu.matmul %22, %23, %cst_7 {dimension_numbers = #tpu.dot_dimension_numbers<[1], [0], [0], [1], [0, 0, 1, 1], [], []>} : vector<128x128xbf16>, vector<128x128xbf16>, vector<128x128xf32> -> vector<128x128xf32>
    %c0_8 = arith.constant 0 : index
    %c0_9 = arith.constant 0 : index
    %25 = vector.load %arg3[%c0_8, %c0_9] : memref<1x128xf32, #tpu.memory_space<vmem>>, vector<1x128xf32>
    %26 = vector.broadcast %25 : vector<1x128xf32> to vector<128x128xf32>
    %27 = arith.addf %24, %26 : vector<128x128xf32>
    %cst_10 = arith.constant dense<0.000000e+00> : vector<128xf32>
    %28 = vector.multi_reduction <add>, %27, %cst_10 [0] : vector<128x128xf32> to vector<128xf32>
    %29 = vector.shape_cast %28 : vector<128xf32> to vector<1x128xf32>
    %cst_11 = arith.constant 1.280000e+02 : f32
    %30 = vector.broadcast %cst_11 : f32 to vector<1x128xf32>
    %31 = arith.divf %29, %30 : vector<1x128xf32>
    %32 = vector.broadcast %31 : vector<1x128xf32> to vector<128x128xf32>
    %33 = arith.subf %27, %32 : vector<128x128xf32>
    %34 = arith.mulf %33, %33 : vector<128x128xf32>
    %cst_12 = arith.constant dense<0.000000e+00> : vector<128xf32>
    %35 = vector.multi_reduction <add>, %34, %cst_12 [0] : vector<128x128xf32> to vector<128xf32>
    %36 = vector.shape_cast %35 : vector<128xf32> to vector<1x128xf32>
    %37 = tpu.concatenate %31, %36 in 0 : vector<1x128xf32>, vector<1x128xf32> -> vector<2x128xf32>
    %38 = vector.shape_cast %37 : vector<2x128xf32> to vector<1x2x128xf32>
    %c0_13 = arith.constant 0 : index
    %c0_14 = arith.constant 0 : index
    %c0_15 = arith.constant 0 : index
    %39 = vector.load %arg5[%c0_13, %c0_14, %c0_15] : memref<1x2x128xf32, #tpu.memory_space<vmem>>, vector<1x2x128xf32>
    tpu.vector_store %arg5[%c0_13, %c0_14, %c0_15], %38 {strides = array<i32>} : memref<1x2x128xf32, #tpu.memory_space<vmem>>, vector<1x2x128xf32>,
    %40 = vector.shape_cast %27 : vector<128x128xf32> to vector<2x8x8x128xf32>
    %41 = vector.extract_strided_slice %40 {offsets = [0, 0, 0, 0], sizes = [2, 8, 8, 8], strides = [1, 1, 1, 1]} : vector<2x8x8x128xf32> to vector<2x8x8x8xf32>
    %42 = arith.truncf %41 : vector<2x8x8x8xf32> to vector<2x8x8x8xbf16>
    %c0_16 = arith.constant 0 : index
    %c0_17 = arith.constant 0 : index
    %c0_18 = arith.constant 0 : index
    %c0_19 = arith.constant 0 : index
    %43 = vector.load %arg4[%c0_16, %c0_17, %c0_18, %c0_19] : memref<2x8x8x8xbf16, #tpu.memory_space<vmem>>, vector<2x8x8x8xbf16>
    tpu.vector_store %arg4[%c0_16, %c0_17, %c0_18, %c0_19], %42 {strides = array<i32>} : memref<2x8x8x8xbf16, #tpu.memory_space<vmem>>, vector<2x8x8x8xbf16>,
    return
  }
  func.func @transform_0(%arg0: i32) -> (i32, i32, i32, i32) {
    %c0_i32 = arith.constant 0 : i32
    %c0_i32_0 = arith.constant 0 : i32
    %c0_i32_1 = arith.constant 0 : i32
    %c0_i32_2 = arith.constant 0 : i32
    return %arg0, %c0_i32, %c0_i32_0, %c0_i32_1 : i32, i32, i32, i32
  }
  func.func @transform_1(%arg0: i32) -> (i32, i32) {
    %c0_i32 = arith.constant 0 : i32
    %c0_i32_0 = arith.constant 0 : i32
    %c0_i32_1 = arith.constant 0 : i32
    return %c0_i32, %c0_i32_0 : i32, i32
  }
  func.func @transform_2(%arg0: i32) -> (i32, i32) {
    %c0_i32 = arith.constant 0 : i32
    %c0_i32_0 = arith.constant 0 : i32
    %c0_i32_1 = arith.constant 0 : i32
    return %c0_i32, %c0_i32_0 : i32, i32
  }
  func.func @transform_3(%arg0: i32) -> (i32, i32, i32, i32) {
    %c0_i32 = arith.constant 0 : i32
    %c0_i32_0 = arith.constant 0 : i32
    %c0_i32_1 = arith.constant 0 : i32
    %c0_i32_2 = arith.constant 0 : i32
    return %arg0, %c0_i32, %c0_i32_0, %c0_i32_1 : i32, i32, i32, i32
  }
  func.func @transform_4(%arg0: i32) -> (i32, i32, i32) {
    %c0_i32 = arith.constant 0 : i32
    %c0_i32_0 = arith.constant 0 : i32
    %c0_i32_1 = arith.constant 0 : i32
    return %arg0, %c0_i32, %c0_i32_0 : i32, i32, i32
  }
}

module attributes {stable_mosaic.version = 11 : i64} {
  func.func @_stage2_kernel(%arg0: i32, %arg1: memref<2x8x8x8xbf16, #tpu.memory_space<vmem>>, %arg2: memref<1x8xf32, #tpu.memory_space<vmem>>, %arg3: memref<1x8xf32, #tpu.memory_space<vmem>>, %arg4: memref<128x128xbf16, #tpu.memory_space<vmem>>, %arg5: memref<1x128xf32, #tpu.memory_space<vmem>>, %arg6: memref<2x8x8x8xbf16, #tpu.memory_space<vmem>>, %arg7: memref<1x2x128xf32, #tpu.memory_space<vmem>>) attributes {dimension_semantics = [#tpu.dimension_semantics<parallel>], iteration_bounds = array<i64: 1>, scalar_prefetch = 0 : i64, scratch_operands = 0 : i64, tpu.core_type = #tpu.core_type<tc>, window_params = [{transform_indices = @transform_0, window_bounds = array<i64: 2, 8, 8, 8>}, {pipeline_mode = #tpu.pipeline_mode<synchronous>, transform_indices = @transform_1, window_bounds = array<i64: 1, 8>}, {pipeline_mode = #tpu.pipeline_mode<synchronous>, transform_indices = @transform_2, window_bounds = array<i64: 1, 8>}, {pipeline_mode = #tpu.pipeline_mode<synchronous>, transform_indices = @transform_3, window_bounds = array<i64: 128, 128>}, {pipeline_mode = #tpu.pipeline_mode<synchronous>, transform_indices = @transform_4, window_bounds = array<i64: 1, 128>}, {transform_indices = @transform_5, window_bounds = array<i64: 2, 8, 8, 8>}, {transform_indices = @transform_6, window_bounds = array<i64: 1, 2, 128>}]} {
    %c0 = arith.constant 0 : index
    %c0_0 = arith.constant 0 : index
    %0 = vector.load %arg2[%c0, %c0_0] : memref<1x8xf32, #tpu.memory_space<vmem>>, vector<1x8xf32>
    %1 = vector.shape_cast %0 : vector<1x8xf32> to vector<1x1x1x8xf32>
    %c0_1 = arith.constant 0 : index
    %c0_2 = arith.constant 0 : index
    %2 = vector.load %arg3[%c0_1, %c0_2] : memref<1x8xf32, #tpu.memory_space<vmem>>, vector<1x8xf32>
    %3 = vector.shape_cast %2 : vector<1x8xf32> to vector<1x1x1x8xf32>
    %c0_3 = arith.constant 0 : index
    %c0_4 = arith.constant 0 : index
    %c0_5 = arith.constant 0 : index
    %c0_6 = arith.constant 0 : index
    %4 = vector.load %arg1[%c0_3, %c0_4, %c0_5, %c0_6] : memref<2x8x8x8xbf16, #tpu.memory_space<vmem>>, vector<2x8x8x8xbf16>
    %5 = arith.extf %4 : vector<2x8x8x8xbf16> to vector<2x8x8x8xf32>
    %6 = vector.broadcast %1 : vector<1x1x1x8xf32> to vector<2x8x8x8xf32>
    %7 = arith.mulf %5, %6 : vector<2x8x8x8xf32>
    %8 = vector.broadcast %3 : vector<1x1x1x8xf32> to vector<2x8x8x8xf32>
    %9 = arith.addf %7, %8 : vector<2x8x8x8xf32>
    %cst = arith.constant 0.000000e+00 : f32
    %10 = vector.broadcast %cst : f32 to vector<2x8x8x8xf32>
    %11 = arith.maximumf %9, %10 : vector<2x8x8x8xf32>
    %12 = arith.truncf %11 : vector<2x8x8x8xf32> to vector<2x8x8x8xbf16>
    %cst_7 = arith.constant 0.000000e+00 : bf16
    %13 = vector.broadcast %cst_7 : bf16 to vector<2x1x8x8xbf16>
    %14 = tpu.concatenate %13, %12, %13 in 1 : vector<2x1x8x8xbf16>, vector<2x8x8x8xbf16>, vector<2x1x8x8xbf16> -> vector<2x10x8x8xbf16>
    %cst_8 = arith.constant 0.000000e+00 : bf16
    %15 = vector.broadcast %cst_8 : bf16 to vector<2x10x1x8xbf16>
    %16 = tpu.concatenate %15, %14, %15 in 2 : vector<2x10x1x8xbf16>, vector<2x10x8x8xbf16>, vector<2x10x1x8xbf16> -> vector<2x10x10x8xbf16>
    %17 = vector.extract_strided_slice %16 {offsets = [0, 0, 0, 0], sizes = [2, 8, 10, 8], strides = [1, 1, 1, 1]} : vector<2x10x10x8xbf16> to vector<2x8x10x8xbf16>
    %18 = vector.extract_strided_slice %16 {offsets = [0, 1, 0, 0], sizes = [2, 8, 10, 8], strides = [1, 1, 1, 1]} : vector<2x10x10x8xbf16> to vector<2x8x10x8xbf16>
    %19 = vector.extract_strided_slice %16 {offsets = [0, 2, 0, 0], sizes = [2, 8, 10, 8], strides = [1, 1, 1, 1]} : vector<2x10x10x8xbf16> to vector<2x8x10x8xbf16>
    %20 = tpu.concatenate %17, %18, %19 in 3 : vector<2x8x10x8xbf16>, vector<2x8x10x8xbf16>, vector<2x8x10x8xbf16> -> vector<2x8x10x24xbf16>
    %21 = vector.extract_strided_slice %20 {offsets = [0, 0, 0, 0], sizes = [2, 8, 8, 24], strides = [1, 1, 1, 1]} : vector<2x8x10x24xbf16> to vector<2x8x8x24xbf16>
    %22 = vector.extract_strided_slice %20 {offsets = [0, 0, 1, 0], sizes = [2, 8, 8, 24], strides = [1, 1, 1, 1]} : vector<2x8x10x24xbf16> to vector<2x8x8x24xbf16>
    %23 = vector.extract_strided_slice %20 {offsets = [0, 0, 2, 0], sizes = [2, 8, 8, 24], strides = [1, 1, 1, 1]} : vector<2x8x10x24xbf16> to vector<2x8x8x24xbf16>
    %24 = tpu.concatenate %21, %22, %23 in 3 : vector<2x8x8x24xbf16>, vector<2x8x8x24xbf16>, vector<2x8x8x24xbf16> -> vector<2x8x8x72xbf16>
    %cst_9 = arith.constant 0.000000e+00 : bf16
    %25 = vector.broadcast %cst_9 : bf16 to vector<2x8x8x56xbf16>
    %26 = tpu.concatenate %24, %25 in 3 : vector<2x8x8x72xbf16>, vector<2x8x8x56xbf16> -> vector<2x8x8x128xbf16>
    %27 = vector.shape_cast %26 : vector<2x8x8x128xbf16> to vector<128x128xbf16>
    %c0_10 = arith.constant 0 : index
    %c0_11 = arith.constant 0 : index
    %28 = vector.load %arg4[%c0_10, %c0_11] : memref<128x128xbf16, #tpu.memory_space<vmem>>, vector<128x128xbf16>
    %cst_12 = arith.constant dense<0.000000e+00> : vector<128x128xf32>
    %29 = tpu.matmul %27, %28, %cst_12 {dimension_numbers = #tpu.dot_dimension_numbers<[1], [0], [0], [1], [0, 0, 1, 1], [], []>} : vector<128x128xbf16>, vector<128x128xbf16>, vector<128x128xf32> -> vector<128x128xf32>
    %c0_13 = arith.constant 0 : index
    %c0_14 = arith.constant 0 : index
    %30 = vector.load %arg5[%c0_13, %c0_14] : memref<1x128xf32, #tpu.memory_space<vmem>>, vector<1x128xf32>
    %31 = vector.broadcast %30 : vector<1x128xf32> to vector<128x128xf32>
    %32 = arith.addf %29, %31 : vector<128x128xf32>
    %cst_15 = arith.constant dense<0.000000e+00> : vector<128xf32>
    %33 = vector.multi_reduction <add>, %32, %cst_15 [0] : vector<128x128xf32> to vector<128xf32>
    %34 = vector.shape_cast %33 : vector<128xf32> to vector<1x128xf32>
    %cst_16 = arith.constant 1.280000e+02 : f32
    %35 = vector.broadcast %cst_16 : f32 to vector<1x128xf32>
    %36 = arith.divf %34, %35 : vector<1x128xf32>
    %37 = vector.broadcast %36 : vector<1x128xf32> to vector<128x128xf32>
    %38 = arith.subf %32, %37 : vector<128x128xf32>
    %39 = arith.mulf %38, %38 : vector<128x128xf32>
    %cst_17 = arith.constant dense<0.000000e+00> : vector<128xf32>
    %40 = vector.multi_reduction <add>, %39, %cst_17 [0] : vector<128x128xf32> to vector<128xf32>
    %41 = vector.shape_cast %40 : vector<128xf32> to vector<1x128xf32>
    %42 = tpu.concatenate %36, %41 in 0 : vector<1x128xf32>, vector<1x128xf32> -> vector<2x128xf32>
    %43 = vector.shape_cast %42 : vector<2x128xf32> to vector<1x2x128xf32>
    %c0_18 = arith.constant 0 : index
    %c0_19 = arith.constant 0 : index
    %c0_20 = arith.constant 0 : index
    %44 = vector.load %arg7[%c0_18, %c0_19, %c0_20] : memref<1x2x128xf32, #tpu.memory_space<vmem>>, vector<1x2x128xf32>
    tpu.vector_store %arg7[%c0_18, %c0_19, %c0_20], %43 {strides = array<i32>} : memref<1x2x128xf32, #tpu.memory_space<vmem>>, vector<1x2x128xf32>,
    %45 = vector.shape_cast %32 : vector<128x128xf32> to vector<2x8x8x128xf32>
    %46 = vector.extract_strided_slice %45 {offsets = [0, 0, 0, 0], sizes = [2, 8, 8, 8], strides = [1, 1, 1, 1]} : vector<2x8x8x128xf32> to vector<2x8x8x8xf32>
    %47 = arith.truncf %46 : vector<2x8x8x8xf32> to vector<2x8x8x8xbf16>
    %c0_21 = arith.constant 0 : index
    %c0_22 = arith.constant 0 : index
    %c0_23 = arith.constant 0 : index
    %c0_24 = arith.constant 0 : index
    %48 = vector.load %arg6[%c0_21, %c0_22, %c0_23, %c0_24] : memref<2x8x8x8xbf16, #tpu.memory_space<vmem>>, vector<2x8x8x8xbf16>
    tpu.vector_store %arg6[%c0_21, %c0_22, %c0_23, %c0_24], %47 {strides = array<i32>} : memref<2x8x8x8xbf16, #tpu.memory_space<vmem>>, vector<2x8x8x8xbf16>,
    return
  }
  func.func @transform_0(%arg0: i32) -> (i32, i32, i32, i32) {
    %c0_i32 = arith.constant 0 : i32
    %c0_i32_0 = arith.constant 0 : i32
    %c0_i32_1 = arith.constant 0 : i32
    %c0_i32_2 = arith.constant 0 : i32
    return %arg0, %c0_i32, %c0_i32_0, %c0_i32_1 : i32, i32, i32, i32
  }
  func.func @transform_1(%arg0: i32) -> (i32, i32) {
    %c0_i32 = arith.constant 0 : i32
    %c0_i32_0 = arith.constant 0 : i32
    %c0_i32_1 = arith.constant 0 : i32
    return %c0_i32, %c0_i32_0 : i32, i32
  }
  func.func @transform_2(%arg0: i32) -> (i32, i32) {
    %c0_i32 = arith.constant 0 : i32
    %c0_i32_0 = arith.constant 0 : i32
    %c0_i32_1 = arith.constant 0 : i32
    return %c0_i32, %c0_i32_0 : i32, i32
  }
  func.func @transform_3(%arg0: i32) -> (i32, i32) {
    %c0_i32 = arith.constant 0 : i32
    %c0_i32_0 = arith.constant 0 : i32
    %c0_i32_1 = arith.constant 0 : i32
    return %c0_i32, %c0_i32_0 : i32, i32
  }
  func.func @transform_4(%arg0: i32) -> (i32, i32) {
    %c0_i32 = arith.constant 0 : i32
    %c0_i32_0 = arith.constant 0 : i32
    %c0_i32_1 = arith.constant 0 : i32
    return %c0_i32, %c0_i32_0 : i32, i32
  }
  func.func @transform_5(%arg0: i32) -> (i32, i32, i32, i32) {
    %c0_i32 = arith.constant 0 : i32
    %c0_i32_0 = arith.constant 0 : i32
    %c0_i32_1 = arith.constant 0 : i32
    %c0_i32_2 = arith.constant 0 : i32
    return %arg0, %c0_i32, %c0_i32_0, %c0_i32_1 : i32, i32, i32, i32
  }
  func.func @transform_6(%arg0: i32) -> (i32, i32, i32) {
    %c0_i32 = arith.constant 0 : i32
    %c0_i32_0 = arith.constant 0 : i32
    %c0_i32_1 = arith.constant 0 : i32
    return %arg0, %c0_i32, %c0_i32_0 : i32, i32, i32
  }
}

</mosaic_0001>

<llo_original>
// kernel: down_forward.2
$region0: #{down_forward.2}
  #allocation0 [shape = 'u32[]', space=smem, size = 0x4, offset = 0x4, fixed_abs, tag = 'smem constant byte address 0x4 - core index']
  #allocation1 [shape = 'u32[144,128]{1,0:T(1,128)}', space=vmem, size = 0x12000, scoped, tag = 'internal scratch']
  %s0 = inlined_call_operand.vmem [shape: bf16[2,8,8,16], index: 0, kind: input, shape index: {}]
  %s1 = inlined_call_operand.vmem [shape: bf16[128,128], index: 1, kind: input, shape index: {}]
  %s2 = inlined_call_operand.vmem [shape: f32[1,128], index: 2, kind: input, shape index: {}]
  %s3 = inlined_call_operand.vmem [shape: bf16[2,8,8,8], index: 3, kind: output, shape index: {0}]
  %s4 = inlined_call_operand.vmem [shape: f32[1,2,128], index: 4, kind: output, shape index: {1}]
  %5 = xla_tuple %s3, %s4
  %s6 = sld [smem:[#allocation0]]
  $region30: #{down_forward.2} parent=0
    _
  %s8 = ssub.s32 1, %s6
  %s9 = scalar_select 0, %s8, %s6
  // Predicated region
  $region2: #{down_forward.2} parent=0 // pred_check
    _
  $region3: #{down_forward.2} parent=0 // pred_check_branch
    %11 = sbr.rel (0) target = $region5
  $region4: #{down_forward.2} parent=0 // pred_region
    _
  $region5: #{down_forward.2} parent=0 // pred_fallthru
    _
  // Predicated region
  $region6: #{down_forward.2} parent=0 // pred_check
    _
  $region7: #{down_forward.2} parent=0 // pred_check_branch
    %13 = sbr.rel (0) target = $region9
  $region8: #{down_forward.2} parent=0 // pred_region
    _
  $region9: #{down_forward.2} parent=0 // pred_fallthru
    _
  // Predicated region
  $region10: #{down_forward.2} parent=0 // pred_check
    _
  $region11: #{down_forward.2} parent=0 // pred_check_branch
    %15 = sbr.rel (0) target = $region13
  $region12: #{down_forward.2} parent=0 // pred_region
    _
  $region13: #{down_forward.2} parent=0 // pred_fallthru
    _
  %v17 = vld [vmem:[%s0] sm:$0xf]
  %v18 = vld [vmem:[%s0 + $0x4] sm:$0xf]
  %v19 = vld [vmem:[%s0 + $0x8] sm:$0xf]
  %v20 = vld [vmem:[%s0 + $0xc] sm:$0xf]
  %v21 = vld [vmem:[%s0 + $0x10] sm:$0xf]
  %v22 = vld [vmem:[%s0 + $0x14] sm:$0xf]
  %v23 = vld [vmem:[%s0 + $0x18] sm:$0xf]
  %v24 = vld [vmem:[%s0 + $0x1c] sm:$0xf]
  %v25 = vld [vmem:[%s0 + $0x20] sm:$0xf]
  %v26 = vld [vmem:[%s0 + $0x24] sm:$0xf]
  %v27 = vld [vmem:[%s0 + $0x28] sm:$0xf]
  %v28 = vld [vmem:[%s0 + $0x2c] sm:$0xf]
  %v29 = vld [vmem:[%s0 + $0x30] sm:$0xf]
  %v30 = vld [vmem:[%s0 + $0x34] sm:$0xf]
  %v31 = vld [vmem:[%s0 + $0x38] sm:$0xf]
  %v32 = vld [vmem:[%s0 + $0x3c] sm:$0xf]
  %49 = vrot.lane.b32.xlu0 %v17, 124
  %v50 = vpop.permute.xlu0 %49
  %51 = vrot.lane.b32.xlu0 %v18, 124
  %v52 = vpop.permute.xlu0 %51
  %53 = vrot.lane.b32.xlu0 %v19, 124
  %v54 = vpop.permute.xlu0 %53
  %55 = vrot.lane.b32.xlu0 %v20, 124
  %v56 = vpop.permute.xlu0 %55
  %57 = vrot.lane.b32.xlu0 %v21, 124
  %v58 = vpop.permute.xlu0 %57
  %59 = vrot.lane.b32.xlu0 %v22, 124
  %v60 = vpop.permute.xlu0 %59
  %61 = vrot.lane.b32.xlu0 %v23, 124
  %v62 = vpop.permute.xlu0 %61
  %63 = vrot.lane.b32.xlu0 %v24, 124
  %v64 = vpop.permute.xlu0 %63
  %65 = vrot.lane.b32.xlu0 %v25, 124
  %v66 = vpop.permute.xlu0 %65
  %67 = vrot.lane.b32.xlu0 %v26, 124
  %v68 = vpop.permute.xlu0 %67
  %69 = vrot.lane.b32.xlu0 %v27, 124
  %v70 = vpop.permute.xlu0 %69
  %71 = vrot.lane.b32.xlu0 %v28, 124
  %v72 = vpop.permute.xlu0 %71
  %73 = vrot.lane.b32.xlu0 %v29, 124
  %v74 = vpop.permute.xlu0 %73
  %75 = vrot.lane.b32.xlu0 %v30, 124
  %v76 = vpop.permute.xlu0 %75
  %77 = vrot.lane.b32.xlu0 %v31, 124
  %v78 = vpop.permute.xlu0 %77
  %79 = vrot.lane.b32.xlu0 %v32, 124
  %v80 = vpop.permute.xlu0 %79
  %v97 = vmax.bf16 %v17, %v50
  %v98 = vmax.bf16 %v18, %v52
  %v99 = vmax.bf16 %v19, %v54
  %v100 = vmax.bf16 %v20, %v56
  %v101 = vmax.bf16 %v21, %v58
  %v102 = vmax.bf16 %v22, %v60
  %v103 = vmax.bf16 %v23, %v62
  %v104 = vmax.bf16 %v24, %v64
  %v105 = vmax.bf16 %v25, %v66
  %v106 = vmax.bf16 %v26, %v68
  %v107 = vmax.bf16 %v27, %v70
  %v108 = vmax.bf16 %v28, %v72
  %v109 = vmax.bf16 %v29, %v74
  %v110 = vmax.bf16 %v30, %v76
  %v111 = vmax.bf16 %v31, %v78
  %v112 = vmax.bf16 %v32, %v80
  %129 = vrot.lane.b32.xlu0 %v97, 120
  %v130 = vpop.permute.xlu0 %129
  %131 = vrot.lane.b32.xlu0 %v98, 120
  %v132 = vpop.permute.xlu0 %131
  %133 = vrot.lane.b32.xlu0 %v99, 120
  %v134 = vpop.permute.xlu0 %133
  %135 = vrot.lane.b32.xlu0 %v100, 120
  %v136 = vpop.permute.xlu0 %135
  %137 = vrot.lane.b32.xlu0 %v101, 120
  %v138 = vpop.permute.xlu0 %137
  %139 = vrot.lane.b32.xlu0 %v102, 120
  %v140 = vpop.permute.xlu0 %139
  %141 = vrot.lane.b32.xlu0 %v103, 120
  %v142 = vpop.permute.xlu0 %141
  %143 = vrot.lane.b32.xlu0 %v104, 120
  %v144 = vpop.permute.xlu0 %143
  %145 = vrot.lane.b32.xlu0 %v105, 120
  %v146 = vpop.permute.xlu0 %145
  %147 = vrot.lane.b32.xlu0 %v106, 120
  %v148 = vpop.permute.xlu0 %147
  %149 = vrot.lane.b32.xlu0 %v107, 120
  %v150 = vpop.permute.xlu0 %149
  %151 = vrot.lane.b32.xlu0 %v108, 120
  %v152 = vpop.permute.xlu0 %151
  %153 = vrot.lane.b32.xlu0 %v109, 120
  %v154 = vpop.permute.xlu0 %153
  %155 = vrot.lane.b32.xlu0 %v110, 120
  %v156 = vpop.permute.xlu0 %155
  %157 = vrot.lane.b32.xlu0 %v111, 120
  %v158 = vpop.permute.xlu0 %157
  %159 = vrot.lane.b32.xlu0 %v112, 120
  %v160 = vpop.permute.xlu0 %159
  %v177 = vmax.bf16 %v97, %v130
  %v178 = vmax.bf16 %v98, %v132
  %v179 = vmax.bf16 %v99, %v134
  %v180 = vmax.bf16 %v100, %v136
  %v181 = vmax.bf16 %v101, %v138
  %v182 = vmax.bf16 %v102, %v140
  %v183 = vmax.bf16 %v103, %v142
  %v184 = vmax.bf16 %v104, %v144
  %v185 = vmax.bf16 %v105, %v146
  %v186 = vmax.bf16 %v106, %v148
  %v187 = vmax.bf16 %v107, %v150
  %v188 = vmax.bf16 %v108, %v152
  %v189 = vmax.bf16 %v109, %v154
  %v190 = vmax.bf16 %v110, %v156
  %v191 = vmax.bf16 %v111, %v158
  %v192 = vmax.bf16 %v112, %v160
  %v194 = vshrl.u32 0, 16
  %v196 = vrot.slane %v194, 7
  %v197 = vshll.u32 0, 16
  %v199 = vor.u32 %v196, %v197
  %v201 = vshrl.u32 %v177, 16
  %v203 = vrot.slane %v201, 7
  %v204 = vshll.u32 %v177, 16
  %v206 = vor.u32 %v203, %v204
  %v208 = vshrl.u32 %v178, 16
  %v210 = vrot.slane %v208, 7
  %v211 = vshll.u32 %v178, 16
  %v213 = vor.u32 %v210, %v211
  %v215 = vshrl.u32 %v179, 16
  %v217 = vrot.slane %v215, 7
  %v218 = vshll.u32 %v179, 16
  %v220 = vor.u32 %v217, %v218
  %v222 = vshrl.u32 %v180, 16
  %v224 = vrot.slane %v222, 7
  %v225 = vshll.u32 %v180, 16
  %v227 = vor.u32 %v224, %v225
  %v229 = vshrl.u32 %v181, 16
  %v231 = vrot.slane %v229, 7
  %v232 = vshll.u32 %v181, 16
  %v234 = vor.u32 %v231, %v232
  %v236 = vshrl.u32 %v182, 16
  %v238 = vrot.slane %v236, 7
  %v239 = vshll.u32 %v182, 16
  %v241 = vor.u32 %v238, %v239
  %v243 = vshrl.u32 %v183, 16
  %v245 = vrot.slane %v243, 7
  %v246 = vshll.u32 %v183, 16
  %v248 = vor.u32 %v245, %v246
  %v250 = vshrl.u32 %v184, 16
  %v252 = vrot.slane %v250, 7
  %v253 = vshll.u32 %v184, 16
  %v255 = vor.u32 %v252, %v253
  %v257 = vshrl.u32 %v185, 16
  %v259 = vrot.slane %v257, 7
  %v260 = vshll.u32 %v185, 16
  %v262 = vor.u32 %v259, %v260
  %v264 = vshrl.u32 %v186, 16
  %v266 = vrot.slane %v264, 7
  %v267 = vshll.u32 %v186, 16
  %v269 = vor.u32 %v266, %v267
  %v271 = vshrl.u32 %v187, 16
  %v273 = vrot.slane %v271, 7
  %v274 = vshll.u32 %v187, 16
  %v276 = vor.u32 %v273, %v274
  %v278 = vshrl.u32 %v188, 16
  %v280 = vrot.slane %v278, 7
  %v281 = vshll.u32 %v188, 16
  %v283 = vor.u32 %v280, %v281
  %v285 = vshrl.u32 %v189, 16
  %v287 = vrot.slane %v285, 7
  %v288 = vshll.u32 %v189, 16
  %v290 = vor.u32 %v287, %v288
  %v292 = vshrl.u32 %v190, 16
  %v294 = vrot.slane %v292, 7
  %v295 = vshll.u32 %v190, 16
  %v297 = vor.u32 %v294, %v295
  %v299 = vshrl.u32 %v191, 16
  %v301 = vrot.slane %v299, 7
  %v302 = vshll.u32 %v191, 16
  %v304 = vor.u32 %v301, %v302
  %v306 = vshrl.u32 %v192, 16
  %v308 = vrot.slane %v306, 7
  %v309 = vshll.u32 %v192, 16
  %v311 = vor.u32 %v308, %v309
  %vm329 = vcmask 1040384
  %vm330 = vsmask.f32 256
  %vm331 = vmand %vm329, %vm330
  %v332 = vsel %vm331, 0, %v199
  %v333 = vsel %vm331, 0, %v206
  %v334 = vsel %vm331, 0, %v213
  %v335 = vsel %vm331, 0, %v220
  %v336 = vsel %vm331, 0, %v227
  %v337 = vsel %vm331, 0, %v234
  %v338 = vsel %vm331, 0, %v241
  %v339 = vsel %vm331, 0, %v248
  %v340 = vsel %vm331, 0, %v255
  %v341 = vsel %vm331, 0, %v262
  %v342 = vsel %vm331, 0, %v269
  %v343 = vsel %vm331, 0, %v276
  %v344 = vsel %vm331, 0, %v283
  %v345 = vsel %vm331, 0, %v290
  %v346 = vsel %vm331, 0, %v297
  %v347 = vsel %vm331, 0, %v304
  %v348 = vsel %vm331, 0, %v311
  %vm349 = vcmask 1044480
  %vm350 = vsmask.f32 4352
  %vm351 = vmand %vm349, %vm350
  %v352 = vsel %vm351, %v332, 0
  %v353 = vsel %vm351, %v333, 0
  %v354 = vsel %vm351, %v334, 0
  %v355 = vsel %vm351, %v335, 0
  %v356 = vsel %vm351, %v336, 0
  %v357 = vsel %vm351, %v337, 0
  %v358 = vsel %vm351, %v338, 0
  %v359 = vsel %vm351, %v339, 0
  %v360 = vsel %vm351, %v340, 0
  %v361 = vsel %vm351, %v341, 0
  %v362 = vsel %vm351, %v342, 0
  %v363 = vsel %vm351, %v343, 0
  %v364 = vsel %vm351, %v344, 0
  %v365 = vsel %vm351, %v345, 0
  %v366 = vsel %vm351, %v346, 0
  %v367 = vsel %vm351, %v347, 0
  %v368 = vsel %vm351, %v348, 0
  %385 = vrot.lane.b32.xlu0 %v353, 4
  %v386 = vpop.permute.xlu0 %385
  %387 = vrot.lane.b32.xlu0 %v354, 4
  %v388 = vpop.permute.xlu0 %387
  %389 = vrot.lane.b32.xlu0 %v355, 4
  %v390 = vpop.permute.xlu0 %389
  %391 = vrot.lane.b32.xlu0 %v356, 4
  %v392 = vpop.permute.xlu0 %391
  %393 = vrot.lane.b32.xlu0 %v357, 4
  %v394 = vpop.permute.xlu0 %393
  %395 = vrot.lane.b32.xlu0 %v358, 4
  %v396 = vpop.permute.xlu0 %395
  %397 = vrot.lane.b32.xlu0 %v359, 4
  %v398 = vpop.permute.xlu0 %397
  %399 = vrot.lane.b32.xlu0 %v360, 4
  %v400 = vpop.permute.xlu0 %399
  %401 = vrot.lane.b32.xlu0 %v361, 4
  %v402 = vpop.permute.xlu0 %401
  %403 = vrot.lane.b32.xlu0 %v362, 4
  %v404 = vpop.permute.xlu0 %403
  %405 = vrot.lane.b32.xlu0 %v363, 4
  %v406 = vpop.permute.xlu0 %405
  %407 = vrot.lane.b32.xlu0 %v364, 4
  %v408 = vpop.permute.xlu0 %407
  %409 = vrot.lane.b32.xlu0 %v365, 4
  %v410 = vpop.permute.xlu0 %409
  %411 = vrot.lane.b32.xlu0 %v366, 4
  %v412 = vpop.permute.xlu0 %411
  %413 = vrot.lane.b32.xlu0 %v367, 4
  %v414 = vpop.permute.xlu0 %413
  %415 = vrot.lane.b32.xlu0 %v368, 4
  %v416 = vpop.permute.xlu0 %415
  %418 = vrot.lane.b32.xlu0 %v354, 8
  %v419 = vpop.permute.xlu0 %418
  %420 = vrot.lane.b32.xlu0 %v355, 8
  %v421 = vpop.permute.xlu0 %420
  %422 = vrot.lane.b32.xlu0 %v356, 8
  %v423 = vpop.permute.xlu0 %422
  %424 = vrot.lane.b32.xlu0 %v357, 8
  %v425 = vpop.permute.xlu0 %424
  %426 = vrot.lane.b32.xlu0 %v358, 8
  %v427 = vpop.permute.xlu0 %426
  %428 = vrot.lane.b32.xlu0 %v359, 8
  %v429 = vpop.permute.xlu0 %428
  %430 = vrot.lane.b32.xlu0 %v360, 8
  %v431 = vpop.permute.xlu0 %430
  %432 = vrot.lane.b32.xlu0 %v352, 8
  %v433 = vpop.permute.xlu0 %432
  %434 = vrot.lane.b32.xlu0 %v362, 8
  %v435 = vpop.permute.xlu0 %434
  %436 = vrot.lane.b32.xlu0 %v363, 8
  %v437 = vpop.permute.xlu0 %436
  %438 = vrot.lane.b32.xlu0 %v364, 8
  %v439 = vpop.permute.xlu0 %438
  %440 = vrot.lane.b32.xlu0 %v365, 8
  %v441 = vpop.permute.xlu0 %440
  %442 = vrot.lane.b32.xlu0 %v366, 8
  %v443 = vpop.permute.xlu0 %442
  %444 = vrot.lane.b32.xlu0 %v367, 8
  %v445 = vpop.permute.xlu0 %444
  %446 = vrot.lane.b32.xlu0 %v368, 8
  %v447 = vpop.permute.xlu0 %446
  %vm448 = vcmask 31744
  %v451 = vsel %vm448, %v352, %v386
  %v454 = vsel %vm448, %v353, %v388
  %v457 = vsel %vm448, %v354, %v390
  %v460 = vsel %vm448, %v355, %v392
  %v463 = vsel %vm448, %v356, %v394
  %v466 = vsel %vm448, %v357, %v396
  %v469 = vsel %vm448, %v358, %v398
  %v472 = vsel %vm448, %v359, %v400
  %v474 = vsel %vm448, %v352, %v402
  %v477 = vsel %vm448, %v361, %v404
  %v480 = vsel %vm448, %v362, %v406
  %v483 = vsel %vm448, %v363, %v408
  %v486 = vsel %vm448, %v364, %v410
  %v489 = vsel %vm448, %v365, %v412
  %v492 = vsel %vm448, %v366, %v414
  %v495 = vsel %vm448, %v367, %v416
  %vm496 = vcmask 64512
  %v498 = vsel %vm496, %v451, %v419
  %v500 = vsel %vm496, %v454, %v421
  %v502 = vsel %vm496, %v457, %v423
  %v504 = vsel %vm496, %v460, %v425
  %v506 = vsel %vm496, %v463, %v427
  %v508 = vsel %vm496, %v466, %v429
  %v510 = vsel %vm496, %v469, %v431
  %v512 = vsel %vm496, %v472, %v433
  %v514 = vsel %vm496, %v474, %v435
  %v516 = vsel %vm496, %v477, %v437
  %v518 = vsel %vm496, %v480, %v439
  %v520 = vsel %vm496, %v483, %v441
  %v522 = vsel %vm496, %v486, %v443
  %v524 = vsel %vm496, %v489, %v445
  %v526 = vsel %vm496, %v492, %v447
  %v527 = vsel %vm496, %v495, %v433
  %v528 = vshrl.u32 %v498, 16
  %v530 = vshll.u32 %v498, 16
  %v532 = vrot.slane %v530, 1
  %v533 = vor.u32 %v528, %v532
  %v534 = vshrl.u32 %v500, 16
  %v536 = vshll.u32 %v500, 16
  %v538 = vrot.slane %v536, 1
  %v539 = vor.u32 %v534, %v538
  %v540 = vshrl.u32 %v502, 16
  %v542 = vshll.u32 %v502, 16
  %v544 = vrot.slane %v542, 1
  %v545 = vor.u32 %v540, %v544
  %v546 = vshrl.u32 %v504, 16
  %v548 = vshll.u32 %v504, 16
  %v550 = vrot.slane %v548, 1
  %v551 = vor.u32 %v546, %v550
  %v552 = vshrl.u32 %v506, 16
  %v554 = vshll.u32 %v506, 16
  %v556 = vrot.slane %v554, 1
  %v557 = vor.u32 %v552, %v556
  %v558 = vshrl.u32 %v508, 16
  %v560 = vshll.u32 %v508, 16
  %v562 = vrot.slane %v560, 1
  %v563 = vor.u32 %v558, %v562
  %v564 = vshrl.u32 %v510, 16
  %v566 = vshll.u32 %v510, 16
  %v568 = vrot.slane %v566, 1
  %v569 = vor.u32 %v564, %v568
  %v570 = vshrl.u32 %v512, 16
  %v572 = vshll.u32 %v512, 16
  %v574 = vrot.slane %v572, 1
  %v575 = vor.u32 %v570, %v574
  %v576 = vshrl.u32 %v514, 16
  %v578 = vshll.u32 %v514, 16
  %v580 = vrot.slane %v578, 1
  %v581 = vor.u32 %v576, %v580
  %v582 = vshrl.u32 %v516, 16
  %v584 = vshll.u32 %v516, 16
  %v586 = vrot.slane %v584, 1
  %v587 = vor.u32 %v582, %v586
  %v588 = vshrl.u32 %v518, 16
  %v590 = vshll.u32 %v518, 16
  %v592 = vrot.slane %v590, 1
  %v593 = vor.u32 %v588, %v592
  %v594 = vshrl.u32 %v520, 16
  %v596 = vshll.u32 %v520, 16
  %v598 = vrot.slane %v596, 1
  %v599 = vor.u32 %v594, %v598
  %v600 = vshrl.u32 %v522, 16
  %v602 = vshll.u32 %v522, 16
  %v604 = vrot.slane %v602, 1
  %v605 = vor.u32 %v600, %v604
  %v606 = vshrl.u32 %v524, 16
  %v608 = vshll.u32 %v524, 16
  %v610 = vrot.slane %v608, 1
  %v611 = vor.u32 %v606, %v610
  %v612 = vshrl.u32 %v526, 16
  %v614 = vshll.u32 %v526, 16
  %v616 = vrot.slane %v614, 1
  %v617 = vor.u32 %v612, %v616
  %v618 = vshrl.u32 %v527, 16
  %v620 = vshll.u32 %v527, 16
  %v622 = vrot.slane %v620, 1
  %v623 = vor.u32 %v618, %v622
  %624 = vrot.lane.b32.xlu0 %v533, 12
  %v625 = vpop.permute.xlu0 %624
  %626 = vrot.lane.b32.xlu0 %v539, 12
  %v627 = vpop.permute.xlu0 %626
  %628 = vrot.lane.b32.xlu0 %v545, 12
  %v629 = vpop.permute.xlu0 %628
  %630 = vrot.lane.b32.xlu0 %v551, 12
  %v631 = vpop.permute.xlu0 %630
  %632 = vrot.lane.b32.xlu0 %v557, 12
  %v633 = vpop.permute.xlu0 %632
  %634 = vrot.lane.b32.xlu0 %v563, 12
  %v635 = vpop.permute.xlu0 %634
  %636 = vrot.lane.b32.xlu0 %v569, 12
  %v637 = vpop.permute.xlu0 %636
  %638 = vrot.lane.b32.xlu0 %v575, 12
  %v639 = vpop.permute.xlu0 %638
  %640 = vrot.lane.b32.xlu0 %v581, 12
  %v641 = vpop.permute.xlu0 %640
  %642 = vrot.lane.b32.xlu0 %v587, 12
  %v643 = vpop.permute.xlu0 %642
  %644 = vrot.lane.b32.xlu0 %v593, 12
  %v645 = vpop.permute.xlu0 %644
  %646 = vrot.lane.b32.xlu0 %v599, 12
  %v647 = vpop.permute.xlu0 %646
  %648 = vrot.lane.b32.xlu0 %v605, 12
  %v649 = vpop.permute.xlu0 %648
  %650 = vrot.lane.b32.xlu0 %v611, 12
  %v651 = vpop.permute.xlu0 %650
  %652 = vrot.lane.b32.xlu0 %v617, 12
  %v653 = vpop.permute.xlu0 %652
  %654 = vrot.lane.b32.xlu0 %v623, 12
  %v655 = vpop.permute.xlu0 %654
  %v672 = vrot.slane %v498, 1
  %v673 = vrot.slane %v500, 1
  %v674 = vrot.slane %v502, 1
  %v675 = vrot.slane %v504, 1
  %v676 = vrot.slane %v506, 1
  %v677 = vrot.slane %v508, 1
  %v678 = vrot.slane %v510, 1
  %v679 = vrot.slane %v512, 1
  %v680 = vrot.slane %v514, 1
  %v681 = vrot.slane %v516, 1
  %v682 = vrot.slane %v518, 1
  %v683 = vrot.slane %v520, 1
  %v684 = vrot.slane %v522, 1
  %v685 = vrot.slane %v524, 1
  %v686 = vrot.slane %v526, 1
  %v687 = vrot.slane %v527, 1
  %688 = vrot.lane.b32.xlu0 %v672, 24
  %v689 = vpop.permute.xlu0 %688
  %690 = vrot.lane.b32.xlu0 %v673, 24
  %v691 = vpop.permute.xlu0 %690
  %692 = vrot.lane.b32.xlu0 %v674, 24
  %v693 = vpop.permute.xlu0 %692
  %694 = vrot.lane.b32.xlu0 %v675, 24
  %v695 = vpop.permute.xlu0 %694
  %696 = vrot.lane.b32.xlu0 %v676, 24
  %v697 = vpop.permute.xlu0 %696
  %698 = vrot.lane.b32.xlu0 %v677, 24
  %v699 = vpop.permute.xlu0 %698
  %700 = vrot.lane.b32.xlu0 %v678, 24
  %v701 = vpop.permute.xlu0 %700
  %702 = vrot.lane.b32.xlu0 %v679, 24
  %v703 = vpop.permute.xlu0 %702
  %704 = vrot.lane.b32.xlu0 %v680, 24
  %v705 = vpop.permute.xlu0 %704
  %706 = vrot.lane.b32.xlu0 %v681, 24
  %v707 = vpop.permute.xlu0 %706
  %708 = vrot.lane.b32.xlu0 %v682, 24
  %v709 = vpop.permute.xlu0 %708
  %710 = vrot.lane.b32.xlu0 %v683, 24
  %v711 = vpop.permute.xlu0 %710
  %712 = vrot.lane.b32.xlu0 %v684, 24
  %v713 = vpop.permute.xlu0 %712
  %714 = vrot.lane.b32.xlu0 %v685, 24
  %v715 = vpop.permute.xlu0 %714
  %716 = vrot.lane.b32.xlu0 %v686, 24
  %v717 = vpop.permute.xlu0 %716
  %718 = vrot.lane.b32.xlu0 %v687, 24
  %v719 = vpop.permute.xlu0 %718
  %vm720 = vcmask 97280
  %v722 = vsel %vm720, %v498, %v625
  %v724 = vsel %vm720, %v500, %v627
  %v726 = vsel %vm720, %v502, %v629
  %v728 = vsel %vm720, %v504, %v631
  %v730 = vsel %vm720, %v506, %v633
  %v732 = vsel %vm720, %v508, %v635
  %v734 = vsel %vm720, %v510, %v637
  %v736 = vsel %vm720, %v512, %v639
  %v738 = vsel %vm720, %v514, %v641
  %v740 = vsel %vm720, %v516, %v643
  %v742 = vsel %vm720, %v518, %v645
  %v744 = vsel %vm720, %v520, %v647
  %v746 = vsel %vm720, %v522, %v649
  %v748 = vsel %vm720, %v524, %v651
  %v750 = vsel %vm720, %v526, %v653
  %v752 = vsel %vm720, %v527, %v655
  %vm753 = vcmask 195584
  %v755 = vsel %vm753, %v722, %v689
  %v757 = vsel %vm753, %v724, %v691
  %v759 = vsel %vm753, %v726, %v693
  %v761 = vsel %vm753, %v728, %v695
  %v763 = vsel %vm753, %v730, %v697
  %v765 = vsel %vm753, %v732, %v699
  %v767 = vsel %vm753, %v734, %v701
  %v769 = vsel %vm753, %v736, %v703
  %v771 = vsel %vm753, %v738, %v705
  %v773 = vsel %vm753, %v740, %v707
  %v775 = vsel %vm753, %v742, %v709
  %v777 = vsel %vm753, %v744, %v711
  %v779 = vsel %vm753, %v746, %v713
  %v781 = vsel %vm753, %v748, %v715
  %v783 = vsel %vm753, %v750, %v717
  %v785 = vsel %vm753, %v752, %v719
  %vm786 = vcmask 293888
  %v787 = vsel %vm786, %v755, 0
  %v788 = vsel %vm786, %v757, 0
  %v789 = vsel %vm786, %v759, 0
  %v790 = vsel %vm786, %v761, 0
  %v791 = vsel %vm786, %v763, 0
  %v792 = vsel %vm786, %v765, 0
  %v793 = vsel %vm786, %v767, 0
  %v794 = vsel %vm786, %v769, 0
  %v795 = vsel %vm786, %v771, 0
  %v796 = vsel %vm786, %v773, 0
  %v797 = vsel %vm786, %v775, 0
  %v798 = vsel %vm786, %v777, 0
  %v799 = vsel %vm786, %v779, 0
  %v800 = vsel %vm786, %v781, 0
  %v801 = vsel %vm786, %v783, 0
  %v802 = vsel %vm786, %v785, 0
  %v803 = vld [vmem:[%s1] sm:$0xf]
  %v804 = vld [vmem:[%s1 + $0x4] sm:$0xf]
  %v805 = vld [vmem:[%s1 + $0x8] sm:$0xf]
  %v806 = vld [vmem:[%s1 + $0xc] sm:$0xf]
  %v807 = vld [vmem:[%s1 + $0x10] sm:$0xf]
  %v808 = vld [vmem:[%s1 + $0x14] sm:$0xf]
  %v809 = vld [vmem:[%s1 + $0x18] sm:$0xf]
  %v810 = vld [vmem:[%s1 + $0x1c] sm:$0xf]
  %v811 = vld [vmem:[%s1 + $0x20] sm:$0xf]
  %v812 = vld [vmem:[%s1 + $0x24] sm:$0xf]
  %v813 = vld [vmem:[%s1 + $0x28] sm:$0xf]
  %v814 = vld [vmem:[%s1 + $0x2c] sm:$0xf]
  %v815 = vld [vmem:[%s1 + $0x30] sm:$0xf]
  %v816 = vld [vmem:[%s1 + $0x34] sm:$0xf]
  %v817 = vld [vmem:[%s1 + $0x38] sm:$0xf]
  %v818 = vld [vmem:[%s1 + $0x3c] sm:$0xf]
  %v819 = vld [vmem:[%s2] sm:$0x1]
  %v821 = vlaneseq
  %v822 = vshrl.u32 %v821, 7
  %v823 = vsub.s32 0, %v822
  %v824 = vrot.slane %v819, %v823
  %v842 = vunpack.c.l.b16 %v787
  %v843 = vunpack.c.l.b16 %v788
  %v844 = vunpack.c.l.b16 %v789
  %v845 = vunpack.c.l.b16 %v790
  %v846 = vunpack.c.l.b16 %v791
  %v847 = vunpack.c.l.b16 %v792
  %v848 = vunpack.c.l.b16 %v793
  %v849 = vunpack.c.l.b16 %v794
  %v850 = vunpack.c.l.b16 %v795
  %v851 = vunpack.c.l.b16 %v796
  %v852 = vunpack.c.l.b16 %v797
  %v853 = vunpack.c.l.b16 %v798
  %v854 = vunpack.c.l.b16 %v799
  %v855 = vunpack.c.l.b16 %v800
  %v856 = vunpack.c.l.b16 %v801
  %v857 = vunpack.c.l.b16 %v802
  %v858 = vpack.c.b16 %v843, %v842
  %v859 = vpack.c.b16 %v845, %v844
  %v860 = vpack.c.b16 %v847, %v846
  %v861 = vpack.c.b16 %v849, %v848
  %v862 = vpack.c.b16 %v851, %v850
  %v863 = vpack.c.b16 %v853, %v852
  %v864 = vpack.c.b16 %v855, %v854
  %v865 = vpack.c.b16 %v857, %v856
  %v890 = vunpack.c.l.b16 %v803
  %v891 = vunpack.c.l.b16 %v804
  %v892 = vunpack.c.l.b16 %v805
  %v893 = vunpack.c.l.b16 %v806
  %v894 = vunpack.c.l.b16 %v807
  %v895 = vunpack.c.l.b16 %v808
  %v896 = vunpack.c.l.b16 %v809
  %v897 = vunpack.c.l.b16 %v810
  %v898 = vunpack.c.l.b16 %v811
  %v899 = vunpack.c.l.b16 %v812
  %v900 = vunpack.c.l.b16 %v813
  %v901 = vunpack.c.l.b16 %v814
  %v902 = vunpack.c.l.b16 %v815
  %v903 = vunpack.c.l.b16 %v816
  %v904 = vunpack.c.l.b16 %v817
  %v905 = vunpack.c.l.b16 %v818
  %v906 = vpack.c.b16 %v891, %v890
  %v907 = vpack.c.b16 %v893, %v892
  %v908 = vpack.c.b16 %v895, %v894
  %v909 = vpack.c.b16 %v897, %v896
  %v910 = vpack.c.b16 %v899, %v898
  %v911 = vpack.c.b16 %v901, %v900
  %v912 = vpack.c.b16 %v903, %v902
  %v913 = vpack.c.b16 %v905, %v904
  %922 = vmatprep.subr.bf16.mxu0 0
  %923 = vmatpush1.bf16.msra.mxu0 %v906
  %924 = vmatprep.subr.bf16.mxu0 0
  %925 = vmatpush1.bf16.msra.mxu0 %v907
  %926 = vmatprep.subr.bf16.mxu0 0
  %927 = vmatpush1.bf16.msra.mxu0 %v908
  %928 = vmatprep.subr.bf16.mxu0 0
  %929 = vmatpush1.bf16.msra.mxu0 %v909
  %930 = vmatprep.subr.bf16.mxu0 0
  %931 = vmatpush1.bf16.msra.mxu0 %v910
  %932 = vmatprep.subr.bf16.mxu0 0
  %933 = vmatpush1.bf16.msra.mxu0 %v911
  %934 = vmatprep.subr.bf16.mxu0 0
  %935 = vmatpush1.bf16.msra.mxu0 %v912
  %936 = vmatprep.subr.bf16.mxu0 0
  %937 = vmatpush1.bf16.msra.mxu0 %v913
  %938 = vmatprep.subr.bf16.mxu0 0
  %939 = vmatpush1.bf16.msra.mxu0 0
  %940 = vmatprep.subr.bf16.mxu0 0
  %941 = vmatpush1.bf16.msra.mxu0 0
  %942 = vmatprep.subr.bf16.mxu0 0
  %943 = vmatpush1.bf16.msra.mxu0 0
  %944 = vmatprep.subr.bf16.mxu0 0
  %945 = vmatpush1.bf16.msra.mxu0 0
  %946 = vmatprep.subr.bf16.mxu0 0
  %947 = vmatpush1.bf16.msra.mxu0 0
  %948 = vmatprep.subr.bf16.mxu0 0
  %949 = vmatpush1.bf16.msra.mxu0 0
  %950 = vmatprep.subr.bf16.mxu0 0
  %951 = vmatpush1.bf16.msra.mxu0 0
  %952 = vmatprep.subr.bf16.mxu0 0
  %953 = vmatpush1.bf16.msra.mxu0 0
  %954 = vmatprep.mubr.bf16.mxu0 0
  %955 = vmatmul.mubr.bf16.gmra.mrb[0].mxu0 %v858
  %v956 = vpop.f32.mrb[0].mxu0
  %v957 = vadd.f32 %v824, %v956
  %v958 = vpop.f32.mrb[0].mxu0
  %v959 = vpop.f32.mrb[0].mxu0
  %v960 = vadd.f32 %v824, %v959
  %v961 = vpop.f32.mrb[0].mxu0
  %962 = vmatprep.mubr.bf16.mxu0 0
  %963 = vmatmul.mubr.bf16.gmra.mrb[0].mxu0 %v859
  %v964 = vpop.f32.mrb[0].mxu0
  %v965 = vadd.f32 %v824, %v964
  %v966 = vpop.f32.mrb[0].mxu0
  %v967 = vpop.f32.mrb[0].mxu0
  %v968 = vadd.f32 %v824, %v967
  %v969 = vpop.f32.mrb[0].mxu0
  %970 = vmatprep.mubr.bf16.mxu0 0
  %971 = vmatmul.mubr.bf16.gmra.mrb[0].mxu0 %v860
  %v972 = vpop.f32.mrb[0].mxu0
  %v973 = vadd.f32 %v824, %v972
  %v974 = vpop.f32.mrb[0].mxu0
  %v975 = vpop.f32.mrb[0].mxu0
  %v976 = vadd.f32 %v824, %v975
  %v977 = vpop.f32.mrb[0].mxu0
  %978 = vmatprep.mubr.bf16.mxu0 0
  %979 = vmatmul.mubr.bf16.gmra.mrb[0].mxu0 %v861
  %v980 = vpop.f32.mrb[0].mxu0
  %v981 = vadd.f32 %v824, %v980
  %v982 = vpop.f32.mrb[0].mxu0
  %v983 = vpop.f32.mrb[0].mxu0
  %v984 = vadd.f32 %v824, %v983
  %v985 = vpop.f32.mrb[0].mxu0
  %986 = vmatprep.mubr.bf16.mxu0 0
  %987 = vmatmul.mubr.bf16.gmra.mrb[0].mxu0 %v862
  %v988 = vpop.f32.mrb[0].mxu0
  %v989 = vadd.f32 %v824, %v988
  %v990 = vpop.f32.mrb[0].mxu0
  %v991 = vpop.f32.mrb[0].mxu0
  %v992 = vadd.f32 %v824, %v991
  %v993 = vpop.f32.mrb[0].mxu0
  %994 = vmatprep.mubr.bf16.mxu0 0
  %995 = vmatmul.mubr.bf16.gmra.mrb[0].mxu0 %v863
  %v996 = vpop.f32.mrb[0].mxu0
  %v997 = vadd.f32 %v824, %v996
  %v998 = vpop.f32.mrb[0].mxu0
  %v999 = vpop.f32.mrb[0].mxu0
  %v1000 = vadd.f32 %v824, %v999
  %v1001 = vpop.f32.mrb[0].mxu0
  %1002 = vmatprep.mubr.bf16.mxu0 0
  %1003 = vmatmul.mubr.bf16.gmra.mrb[0].mxu0 %v864
  %v1004 = vpop.f32.mrb[0].mxu0
  %v1005 = vadd.f32 %v824, %v1004
  %v1006 = vpop.f32.mrb[0].mxu0
  %v1007 = vpop.f32.mrb[0].mxu0
  %v1008 = vadd.f32 %v824, %v1007
  %v1009 = vpop.f32.mrb[0].mxu0
  %1010 = vmatprep.mubr.bf16.mxu0 0
  %1011 = vmatmul.mubr.bf16.gmra.mrb[0].mxu0 %v865
  %v1012 = vpop.f32.mrb[0].mxu0
  %v1013 = vadd.f32 %v824, %v1012
  %v1014 = vpop.f32.mrb[0].mxu0
  %v1015 = vpop.f32.mrb[0].mxu0
  %v1016 = vadd.f32 %v824, %v1015
  %v1017 = vpop.f32.mrb[0].mxu0
  %1018 = vdwg.mxu0
  %v1019 = vadd.f32 %v957, %v960
  %v1020 = vadd.f32 %v1019, %v965
  %v1021 = vadd.f32 %v1020, %v968
  %v1022 = vadd.f32 %v1021, %v973
  %v1023 = vadd.f32 %v1022, %v976
  %v1024 = vadd.f32 %v1023, %v981
  %v1025 = vadd.f32 %v1024, %v984
  %v1026 = vadd.f32 %v1025, %v989
  %v1027 = vadd.f32 %v1026, %v992
  %v1028 = vadd.f32 %v1027, %v997
  %v1029 = vadd.f32 %v1028, %v1000
  %v1030 = vadd.f32 %v1029, %v1005
  %v1031 = vadd.f32 %v1030, %v1008
  %v1032 = vadd.f32 %v1031, %v1013
  %v1033 = vadd.f32 %v1032, %v1016
  %v1034 = vrot.slane %v1033, 4
  %v1035 = vadd.f32 %v1033, %v1034
  %v1036 = vrot.slane %v1035, 2
  %v1037 = vadd.f32 %v1035, %v1036
  %v1038 = vrot.slane %v1037, 1
  %v1039 = vadd.f32 %v1037, %v1038
  %v1040 = vrcp.pop 128.0
  %v1041 = vmul.f32 %v1039, %v1040
  %v1042 = vsub.f32 %v957, %v1041
  %v1043 = vsub.f32 %v960, %v1041
  %v1044 = vsub.f32 %v965, %v1041
  %v1045 = vsub.f32 %v968, %v1041
  %v1046 = vsub.f32 %v973, %v1041
  %v1047 = vsub.f32 %v976, %v1041
  %v1048 = vsub.f32 %v981, %v1041
  %v1049 = vsub.f32 %v984, %v1041
  %v1050 = vsub.f32 %v989, %v1041
  %v1051 = vsub.f32 %v992, %v1041
  %v1052 = vsub.f32 %v997, %v1041
  %v1053 = vsub.f32 %v1000, %v1041
  %v1054 = vsub.f32 %v1005, %v1041
  %v1055 = vsub.f32 %v1008, %v1041
  %v1056 = vsub.f32 %v1013, %v1041
  %v1057 = vsub.f32 %v1016, %v1041
  %v1058 = vmul.f32 %v1042, %v1042
  %v1059 = vmul.f32 %v1043, %v1043
  %v1060 = vmul.f32 %v1044, %v1044
  %v1061 = vmul.f32 %v1045, %v1045
  %v1062 = vmul.f32 %v1046, %v1046
  %v1063 = vmul.f32 %v1047, %v1047
  %v1064 = vmul.f32 %v1048, %v1048
  %v1065 = vmul.f32 %v1049, %v1049
  %v1066 = vmul.f32 %v1050, %v1050
  %v1067 = vmul.f32 %v1051, %v1051
  %v1068 = vmul.f32 %v1052, %v1052
  %v1069 = vmul.f32 %v1053, %v1053
  %v1070 = vmul.f32 %v1054, %v1054
  %v1071 = vmul.f32 %v1055, %v1055
  %v1072 = vmul.f32 %v1056, %v1056
  %v1073 = vmul.f32 %v1057, %v1057
  %v1074 = vadd.f32 %v1058, %v1059
  %v1075 = vadd.f32 %v1074, %v1060
  %v1076 = vadd.f32 %v1075, %v1061
  %v1077 = vadd.f32 %v1076, %v1062
  %v1078 = vadd.f32 %v1077, %v1063
  %v1079 = vadd.f32 %v1078, %v1064
  %v1080 = vadd.f32 %v1079, %v1065
  %v1081 = vadd.f32 %v1080, %v1066
  %v1082 = vadd.f32 %v1081, %v1067
  %v1083 = vadd.f32 %v1082, %v1068
  %v1084 = vadd.f32 %v1083, %v1069
  %v1085 = vadd.f32 %v1084, %v1070
  %v1086 = vadd.f32 %v1085, %v1071
  %v1087 = vadd.f32 %v1086, %v1072
  %v1088 = vadd.f32 %v1087, %v1073
  %v1089 = vrot.slane %v1088, 4
  %v1090 = vadd.f32 %v1088, %v1089
  %v1091 = vrot.slane %v1090, 2
  %v1092 = vadd.f32 %v1090, %v1091
  %v1093 = vrot.slane %v1092, 1
  %v1094 = vadd.f32 %v1092, %v1093
  %vm1095 = vcmask 1040384
  %v1096 = vsel %vm1095, %v1041, %v1094
  %1097 = vst [vmem:[%s4] sm:$0x3] %v1096
  %v1098 = vpack.c.bf16 %v957, %v957
  %v1099 = vpack.c.bf16 %v960, %v960
  %v1100 = vpack.c.bf16 %v965, %v965
  %v1101 = vpack.c.bf16 %v968, %v968
  %v1102 = vpack.c.bf16 %v973, %v973
  %v1103 = vpack.c.bf16 %v976, %v976
  %v1104 = vpack.c.bf16 %v981, %v981
  %v1105 = vpack.c.bf16 %v984, %v984
  %v1106 = vpack.c.bf16 %v989, %v989
  %v1107 = vpack.c.bf16 %v992, %v992
  %v1108 = vpack.c.bf16 %v997, %v997
  %v1109 = vpack.c.bf16 %v1000, %v1000
  %v1110 = vpack.c.bf16 %v1005, %v1005
  %v1111 = vpack.c.bf16 %v1008, %v1008
  %v1112 = vpack.c.bf16 %v1013, %v1013
  %v1113 = vpack.c.bf16 %v1016, %v1016
  %vm1114 = vcmask 60416
  %1115 = vst.msk [vmem:[%s3] sm:$0xf] %vm1114, %v1098
  %1116 = vst.msk [vmem:[%s3 + $0x4] sm:$0xf] %vm1114, %v1099
  %1117 = vst.msk [vmem:[%s3 + $0x8] sm:$0xf] %vm1114, %v1100
  %1118 = vst.msk [vmem:[%s3 + $0xc] sm:$0xf] %vm1114, %v1101
  %1119 = vst.msk [vmem:[%s3 + $0x10] sm:$0xf] %vm1114, %v1102
  %1120 = vst.msk [vmem:[%s3 + $0x14] sm:$0xf] %vm1114, %v1103
  %1121 = vst.msk [vmem:[%s3 + $0x18] sm:$0xf] %vm1114, %v1104
  %1122 = vst.msk [vmem:[%s3 + $0x1c] sm:$0xf] %vm1114, %v1105
  %1123 = vst.msk [vmem:[%s3 + $0x20] sm:$0xf] %vm1114, %v1106
  %1124 = vst.msk [vmem:[%s3 + $0x24] sm:$0xf] %vm1114, %v1107
  %1125 = vst.msk [vmem:[%s3 + $0x28] sm:$0xf] %vm1114, %v1108
  %1126 = vst.msk [vmem:[%s3 + $0x2c] sm:$0xf] %vm1114, %v1109
  %1127 = vst.msk [vmem:[%s3 + $0x30] sm:$0xf] %vm1114, %v1110
  %1128 = vst.msk [vmem:[%s3 + $0x34] sm:$0xf] %vm1114, %v1111
  %1129 = vst.msk [vmem:[%s3 + $0x38] sm:$0xf] %vm1114, %v1112
  %1130 = vst.msk [vmem:[%s3 + $0x3c] sm:$0xf] %vm1114, %v1113
  // Predicated region
  $region14: #{down_forward.2} parent=0 // pred_check
    _
  $region15: #{down_forward.2} parent=0 // pred_check_branch
    %1132 = sbr.rel (0) target = $region17
  $region16: #{down_forward.2} parent=0 // pred_region
    _
  $region17: #{down_forward.2} parent=0 // pred_fallthru
    _
  // Predicated region
  $region18: #{down_forward.2} parent=0 // pred_check
    _
  $region19: #{down_forward.2} parent=0 // pred_check_branch
    %1134 = sbr.rel (0) target = $region21
  $region20: #{down_forward.2} parent=0 // pred_region
    _
  $region21: #{down_forward.2} parent=0 // pred_fallthru
    _
  // Predicated region
  $region22: #{down_forward.2} parent=0 // pred_check
    _
  $region23: #{down_forward.2} parent=0 // pred_check_branch
    %1136 = sbr.rel (0) target = $region25
  $region24: #{down_forward.2} parent=0 // pred_region
    _
  $region25: #{down_forward.2} parent=0 // pred_fallthru
    _
  // Predicated region
  $region26: #{down_forward.2} parent=0 // pred_check
    _
  $region27: #{down_forward.2} parent=0 // pred_check_branch
    %1138 = sbr.rel (0) target = $region29
  $region28: #{down_forward.2} parent=0 // pred_region
    _
  $region29: #{down_forward.2} parent=0 // pred_fallthru
    _

// kernel: down_forward.3
$region0: #{down_forward.3}
  #allocation0 [shape = 'u32[]', space=smem, size = 0x4, offset = 0x4, fixed_abs, tag = 'smem constant byte address 0x4 - core index']
  #allocation1 [shape = 'u32[144,128]{1,0:T(1,128)}', space=vmem, size = 0x12000, scoped, tag = 'internal scratch']
  %s0 = inlined_call_operand.vmem [shape: bf16[2,8,8,8], index: 0, kind: input, shape index: {}]
  %s1 = inlined_call_operand.vmem [shape: f32[1,8], index: 1, kind: input, shape index: {}]
  %s2 = inlined_call_operand.vmem [shape: f32[1,8], index: 2, kind: input, shape index: {}]
  %s3 = inlined_call_operand.vmem [shape: bf16[128,128], index: 3, kind: input, shape index: {}]
  %s4 = inlined_call_operand.vmem [shape: f32[1,128], index: 4, kind: input, shape index: {}]
  %s5 = inlined_call_operand.vmem [shape: bf16[2,8,8,8], index: 5, kind: output, shape index: {0}]
  %s6 = inlined_call_operand.vmem [shape: f32[1,2,128], index: 6, kind: output, shape index: {1}]
  %7 = xla_tuple %s5, %s6
  %s8 = sld [smem:[#allocation0]]
  $region38: #{down_forward.3} parent=0
    _
  %s10 = ssub.s32 1, %s8
  %s11 = scalar_select 0, %s10, %s8
  // Predicated region
  $region2: #{down_forward.3} parent=0 // pred_check
    _
  $region3: #{down_forward.3} parent=0 // pred_check_branch
    %13 = sbr.rel (0) target = $region5
  $region4: #{down_forward.3} parent=0 // pred_region
    _
  $region5: #{down_forward.3} parent=0 // pred_fallthru
    _
  // Predicated region
  $region6: #{down_forward.3} parent=0 // pred_check
    _
  $region7: #{down_forward.3} parent=0 // pred_check_branch
    %15 = sbr.rel (0) target = $region9
  $region8: #{down_forward.3} parent=0 // pred_region
    _
  $region9: #{down_forward.3} parent=0 // pred_fallthru
    _
  // Predicated region
  $region10: #{down_forward.3} parent=0 // pred_check
    _
  $region11: #{down_forward.3} parent=0 // pred_check_branch
    %17 = sbr.rel (0) target = $region13
  $region12: #{down_forward.3} parent=0 // pred_region
    _
  $region13: #{down_forward.3} parent=0 // pred_fallthru
    _
  // Predicated region
  $region14: #{down_forward.3} parent=0 // pred_check
    _
  $region15: #{down_forward.3} parent=0 // pred_check_branch
    %19 = sbr.rel (0) target = $region17
  $region16: #{down_forward.3} parent=0 // pred_region
    _
  $region17: #{down_forward.3} parent=0 // pred_fallthru
    _
  // Predicated region
  $region18: #{down_forward.3} parent=0 // pred_check
    _
  $region19: #{down_forward.3} parent=0 // pred_check_branch
    %21 = sbr.rel (0) target = $region21
  $region20: #{down_forward.3} parent=0 // pred_region
    _
  $region21: #{down_forward.3} parent=0 // pred_fallthru
    _
  %v23 = vld [vmem:[%s1] sm:$0x1]
  %v24 = vld [vmem:[%s2] sm:$0x1]
  %v25 = vld [vmem:[%s0] sm:$0xf]
  %v26 = vld [vmem:[%s0 + $0x4] sm:$0xf]
  %v27 = vld [vmem:[%s0 + $0x8] sm:$0xf]
  %v28 = vld [vmem:[%s0 + $0xc] sm:$0xf]
  %v29 = vld [vmem:[%s0 + $0x10] sm:$0xf]
  %v30 = vld [vmem:[%s0 + $0x14] sm:$0xf]
  %v31 = vld [vmem:[%s0 + $0x18] sm:$0xf]
  %v32 = vld [vmem:[%s0 + $0x1c] sm:$0xf]
  %v33 = vld [vmem:[%s0 + $0x20] sm:$0xf]
  %v34 = vld [vmem:[%s0 + $0x24] sm:$0xf]
  %v35 = vld [vmem:[%s0 + $0x28] sm:$0xf]
  %v36 = vld [vmem:[%s0 + $0x2c] sm:$0xf]
  %v37 = vld [vmem:[%s0 + $0x30] sm:$0xf]
  %v38 = vld [vmem:[%s0 + $0x34] sm:$0xf]
  %v39 = vld [vmem:[%s0 + $0x38] sm:$0xf]
  %v40 = vld [vmem:[%s0 + $0x3c] sm:$0xf]
  %v41 = vunpack.c.l.bf16 %v25
  %v42 = vunpack.c.l.bf16 %v26
  %v43 = vunpack.c.l.bf16 %v27
  %v44 = vunpack.c.l.bf16 %v28
  %v45 = vunpack.c.l.bf16 %v29
  %v46 = vunpack.c.l.bf16 %v30
  %v47 = vunpack.c.l.bf16 %v31
  %v48 = vunpack.c.l.bf16 %v32
  %v49 = vunpack.c.l.bf16 %v33
  %v50 = vunpack.c.l.bf16 %v34
  %v51 = vunpack.c.l.bf16 %v35
  %v52 = vunpack.c.l.bf16 %v36
  %v53 = vunpack.c.l.bf16 %v37
  %v54 = vunpack.c.l.bf16 %v38
  %v55 = vunpack.c.l.bf16 %v39
  %v56 = vunpack.c.l.bf16 %v40
  %v58 = vlaneseq
  %v59 = vshrl.u32 %v58, 7
  %v60 = vsub.s32 0, %v59
  %v61 = vrot.slane %v23, %v60
  %v63 = vmul.f32 %v41, %v61
  %v64 = vmul.f32 %v42, %v61
  %v65 = vmul.f32 %v43, %v61
  %v66 = vmul.f32 %v44, %v61
  %v67 = vmul.f32 %v45, %v61
  %v68 = vmul.f32 %v46, %v61
  %v69 = vmul.f32 %v47, %v61
  %v70 = vmul.f32 %v48, %v61
  %v71 = vmul.f32 %v49, %v61
  %v72 = vmul.f32 %v50, %v61
  %v73 = vmul.f32 %v51, %v61
  %v74 = vmul.f32 %v52, %v61
  %v75 = vmul.f32 %v53, %v61
  %v76 = vmul.f32 %v54, %v61
  %v77 = vmul.f32 %v55, %v61
  %v78 = vmul.f32 %v56, %v61
  %v80 = vlaneseq
  %v81 = vshrl.u32 %v80, 7
  %v82 = vsub.s32 0, %v81
  %v83 = vrot.slane %v24, %v82
  %v85 = vadd.f32 %v63, %v83
  %v86 = vadd.f32 %v64, %v83
  %v87 = vadd.f32 %v65, %v83
  %v88 = vadd.f32 %v66, %v83
  %v89 = vadd.f32 %v67, %v83
  %v90 = vadd.f32 %v68, %v83
  %v91 = vadd.f32 %v69, %v83
  %v92 = vadd.f32 %v70, %v83
  %v93 = vadd.f32 %v71, %v83
  %v94 = vadd.f32 %v72, %v83
  %v95 = vadd.f32 %v73, %v83
  %v96 = vadd.f32 %v74, %v83
  %v97 = vadd.f32 %v75, %v83
  %v98 = vadd.f32 %v76, %v83
  %v99 = vadd.f32 %v77, %v83
  %v100 = vadd.f32 %v78, %v83
  %v101 = vmax.f32 %v85, 0.0
  %v102 = vmax.f32 %v86, 0.0
  %v103 = vmax.f32 %v87, 0.0
  %v104 = vmax.f32 %v88, 0.0
  %v105 = vmax.f32 %v89, 0.0
  %v106 = vmax.f32 %v90, 0.0
  %v107 = vmax.f32 %v91, 0.0
  %v108 = vmax.f32 %v92, 0.0
  %v109 = vmax.f32 %v93, 0.0
  %v110 = vmax.f32 %v94, 0.0
  %v111 = vmax.f32 %v95, 0.0
  %v112 = vmax.f32 %v96, 0.0
  %v113 = vmax.f32 %v97, 0.0
  %v114 = vmax.f32 %v98, 0.0
  %v115 = vmax.f32 %v99, 0.0
  %v116 = vmax.f32 %v100, 0.0
  %v117 = vpack.c.bf16 %v101, %v101
  %v118 = vpack.c.bf16 %v102, %v102
  %v119 = vpack.c.bf16 %v103, %v103
  %v120 = vpack.c.bf16 %v104, %v104
  %v121 = vpack.c.bf16 %v105, %v105
  %v122 = vpack.c.bf16 %v106, %v106
  %v123 = vpack.c.bf16 %v107, %v107
  %v124 = vpack.c.bf16 %v108, %v108
  %v125 = vpack.c.bf16 %v109, %v109
  %v126 = vpack.c.bf16 %v110, %v110
  %v127 = vpack.c.bf16 %v111, %v111
  %v128 = vpack.c.bf16 %v112, %v112
  %v129 = vpack.c.bf16 %v113, %v113
  %v130 = vpack.c.bf16 %v114, %v114
  %v131 = vpack.c.bf16 %v115, %v115
  %v132 = vpack.c.bf16 %v116, %v116
  %v134 = vshrl.u32 0, 16
  %v136 = vrot.slane %v134, 7
  %v137 = vshll.u32 0, 16
  %v139 = vor.u32 %v136, %v137
  %v141 = vshrl.u32 %v117, 16
  %v143 = vrot.slane %v141, 7
  %v144 = vshll.u32 %v117, 16
  %v146 = vor.u32 %v143, %v144
  %v148 = vshrl.u32 %v118, 16
  %v150 = vrot.slane %v148, 7
  %v151 = vshll.u32 %v118, 16
  %v153 = vor.u32 %v150, %v151
  %v155 = vshrl.u32 %v119, 16
  %v157 = vrot.slane %v155, 7
  %v158 = vshll.u32 %v119, 16
  %v160 = vor.u32 %v157, %v158
  %v162 = vshrl.u32 %v120, 16
  %v164 = vrot.slane %v162, 7
  %v165 = vshll.u32 %v120, 16
  %v167 = vor.u32 %v164, %v165
  %v169 = vshrl.u32 %v121, 16
  %v171 = vrot.slane %v169, 7
  %v172 = vshll.u32 %v121, 16
  %v174 = vor.u32 %v171, %v172
  %v176 = vshrl.u32 %v122, 16
  %v178 = vrot.slane %v176, 7
  %v179 = vshll.u32 %v122, 16
  %v181 = vor.u32 %v178, %v179
  %v183 = vshrl.u32 %v123, 16
  %v185 = vrot.slane %v183, 7
  %v186 = vshll.u32 %v123, 16
  %v188 = vor.u32 %v185, %v186
  %v190 = vshrl.u32 %v124, 16
  %v192 = vrot.slane %v190, 7
  %v193 = vshll.u32 %v124, 16
  %v195 = vor.u32 %v192, %v193
  %v197 = vshrl.u32 %v125, 16
  %v199 = vrot.slane %v197, 7
  %v200 = vshll.u32 %v125, 16
  %v202 = vor.u32 %v199, %v200
  %v204 = vshrl.u32 %v126, 16
  %v206 = vrot.slane %v204, 7
  %v207 = vshll.u32 %v126, 16
  %v209 = vor.u32 %v206, %v207
  %v211 = vshrl.u32 %v127, 16
  %v213 = vrot.slane %v211, 7
  %v214 = vshll.u32 %v127, 16
  %v216 = vor.u32 %v213, %v214
  %v218 = vshrl.u32 %v128, 16
  %v220 = vrot.slane %v218, 7
  %v221 = vshll.u32 %v128, 16
  %v223 = vor.u32 %v220, %v221
  %v225 = vshrl.u32 %v129, 16
  %v227 = vrot.slane %v225, 7
  %v228 = vshll.u32 %v129, 16
  %v230 = vor.u32 %v227, %v228
  %v232 = vshrl.u32 %v130, 16
  %v234 = vrot.slane %v232, 7
  %v235 = vshll.u32 %v130, 16
  %v237 = vor.u32 %v234, %v235
  %v239 = vshrl.u32 %v131, 16
  %v241 = vrot.slane %v239, 7
  %v242 = vshll.u32 %v131, 16
  %v244 = vor.u32 %v241, %v242
  %v246 = vshrl.u32 %v132, 16
  %v248 = vrot.slane %v246, 7
  %v249 = vshll.u32 %v132, 16
  %v251 = vor.u32 %v248, %v249
  %vm269 = vcmask 1040384
  %vm270 = vsmask.f32 256
  %vm271 = vmand %vm269, %vm270
  %v272 = vsel %vm271, 0, %v139
  %v273 = vsel %vm271, 0, %v146
  %v274 = vsel %vm271, 0, %v153
  %v275 = vsel %vm271, 0, %v160
  %v276 = vsel %vm271, 0, %v167
  %v277 = vsel %vm271, 0, %v174
  %v278 = vsel %vm271, 0, %v181
  %v279 = vsel %vm271, 0, %v188
  %v280 = vsel %vm271, 0, %v195
  %v281 = vsel %vm271, 0, %v202
  %v282 = vsel %vm271, 0, %v209
  %v283 = vsel %vm271, 0, %v216
  %v284 = vsel %vm271, 0, %v223
  %v285 = vsel %vm271, 0, %v230
  %v286 = vsel %vm271, 0, %v237
  %v287 = vsel %vm271, 0, %v244
  %v288 = vsel %vm271, 0, %v251
  %vm289 = vcmask 1044480
  %vm290 = vsmask.f32 4352
  %vm291 = vmand %vm289, %vm290
  %v292 = vsel %vm291, %v272, 0
  %v293 = vsel %vm291, %v273, 0
  %v294 = vsel %vm291, %v274, 0
  %v295 = vsel %vm291, %v275, 0
  %v296 = vsel %vm291, %v276, 0
  %v297 = vsel %vm291, %v277, 0
  %v298 = vsel %vm291, %v278, 0
  %v299 = vsel %vm291, %v279, 0
  %v300 = vsel %vm291, %v280, 0
  %v301 = vsel %vm291, %v281, 0
  %v302 = vsel %vm291, %v282, 0
  %v303 = vsel %vm291, %v283, 0
  %v304 = vsel %vm291, %v284, 0
  %v305 = vsel %vm291, %v285, 0
  %v306 = vsel %vm291, %v286, 0
  %v307 = vsel %vm291, %v287, 0
  %v308 = vsel %vm291, %v288, 0
  %325 = vrot.lane.b32.xlu0 %v293, 8
  %v326 = vpop.permute.xlu0 %325
  %327 = vrot.lane.b32.xlu0 %v294, 8
  %v328 = vpop.permute.xlu0 %327
  %329 = vrot.lane.b32.xlu0 %v295, 8
  %v330 = vpop.permute.xlu0 %329
  %331 = vrot.lane.b32.xlu0 %v296, 8
  %v332 = vpop.permute.xlu0 %331
  %333 = vrot.lane.b32.xlu0 %v297, 8
  %v334 = vpop.permute.xlu0 %333
  %335 = vrot.lane.b32.xlu0 %v298, 8
  %v336 = vpop.permute.xlu0 %335
  %337 = vrot.lane.b32.xlu0 %v299, 8
  %v338 = vpop.permute.xlu0 %337
  %339 = vrot.lane.b32.xlu0 %v300, 8
  %v340 = vpop.permute.xlu0 %339
  %341 = vrot.lane.b32.xlu0 %v301, 8
  %v342 = vpop.permute.xlu0 %341
  %343 = vrot.lane.b32.xlu0 %v302, 8
  %v344 = vpop.permute.xlu0 %343
  %345 = vrot.lane.b32.xlu0 %v303, 8
  %v346 = vpop.permute.xlu0 %345
  %347 = vrot.lane.b32.xlu0 %v304, 8
  %v348 = vpop.permute.xlu0 %347
  %349 = vrot.lane.b32.xlu0 %v305, 8
  %v350 = vpop.permute.xlu0 %349
  %351 = vrot.lane.b32.xlu0 %v306, 8
  %v352 = vpop.permute.xlu0 %351
  %353 = vrot.lane.b32.xlu0 %v307, 8
  %v354 = vpop.permute.xlu0 %353
  %355 = vrot.lane.b32.xlu0 %v308, 8
  %v356 = vpop.permute.xlu0 %355
  %358 = vrot.lane.b32.xlu0 %v294, 16
  %v359 = vpop.permute.xlu0 %358
  %360 = vrot.lane.b32.xlu0 %v295, 16
  %v361 = vpop.permute.xlu0 %360
  %362 = vrot.lane.b32.xlu0 %v296, 16
  %v363 = vpop.permute.xlu0 %362
  %364 = vrot.lane.b32.xlu0 %v297, 16
  %v365 = vpop.permute.xlu0 %364
  %366 = vrot.lane.b32.xlu0 %v298, 16
  %v367 = vpop.permute.xlu0 %366
  %368 = vrot.lane.b32.xlu0 %v299, 16
  %v369 = vpop.permute.xlu0 %368
  %370 = vrot.lane.b32.xlu0 %v300, 16
  %v371 = vpop.permute.xlu0 %370
  %372 = vrot.lane.b32.xlu0 %v292, 16
  %v373 = vpop.permute.xlu0 %372
  %374 = vrot.lane.b32.xlu0 %v302, 16
  %v375 = vpop.permute.xlu0 %374
  %376 = vrot.lane.b32.xlu0 %v303, 16
  %v377 = vpop.permute.xlu0 %376
  %378 = vrot.lane.b32.xlu0 %v304, 16
  %v379 = vpop.permute.xlu0 %378
  %380 = vrot.lane.b32.xlu0 %v305, 16
  %v381 = vpop.permute.xlu0 %380
  %382 = vrot.lane.b32.xlu0 %v306, 16
  %v383 = vpop.permute.xlu0 %382
  %384 = vrot.lane.b32.xlu0 %v307, 16
  %v385 = vpop.permute.xlu0 %384
  %386 = vrot.lane.b32.xlu0 %v308, 16
  %v387 = vpop.permute.xlu0 %386
  %vm388 = vcmask 64512
  %v391 = vsel %vm388, %v292, %v326
  %v394 = vsel %vm388, %v293, %v328
  %v397 = vsel %vm388, %v294, %v330
  %v400 = vsel %vm388, %v295, %v332
  %v403 = vsel %vm388, %v296, %v334
  %v406 = vsel %vm388, %v297, %v336
  %v409 = vsel %vm388, %v298, %v338
  %v412 = vsel %vm388, %v299, %v340
  %v414 = vsel %vm388, %v292, %v342
  %v417 = vsel %vm388, %v301, %v344
  %v420 = vsel %vm388, %v302, %v346
  %v423 = vsel %vm388, %v303, %v348
  %v426 = vsel %vm388, %v304, %v350
  %v429 = vsel %vm388, %v305, %v352
  %v432 = vsel %vm388, %v306, %v354
  %v435 = vsel %vm388, %v307, %v356
  %vm436 = vcmask 130048
  %v438 = vsel %vm436, %v391, %v359
  %v440 = vsel %vm436, %v394, %v361
  %v442 = vsel %vm436, %v397, %v363
  %v444 = vsel %vm436, %v400, %v365
  %v446 = vsel %vm436, %v403, %v367
  %v448 = vsel %vm436, %v406, %v369
  %v450 = vsel %vm436, %v409, %v371
  %v452 = vsel %vm436, %v412, %v373
  %v454 = vsel %vm436, %v414, %v375
  %v456 = vsel %vm436, %v417, %v377
  %v458 = vsel %vm436, %v420, %v379
  %v460 = vsel %vm436, %v423, %v381
  %v462 = vsel %vm436, %v426, %v383
  %v464 = vsel %vm436, %v429, %v385
  %v466 = vsel %vm436, %v432, %v387
  %v467 = vsel %vm436, %v435, %v373
  %v468 = vshrl.u32 %v438, 16
  %v470 = vshll.u32 %v438, 16
  %v472 = vrot.slane %v470, 1
  %v473 = vor.u32 %v468, %v472
  %v474 = vshrl.u32 %v440, 16
  %v476 = vshll.u32 %v440, 16
  %v478 = vrot.slane %v476, 1
  %v479 = vor.u32 %v474, %v478
  %v480 = vshrl.u32 %v442, 16
  %v482 = vshll.u32 %v442, 16
  %v484 = vrot.slane %v482, 1
  %v485 = vor.u32 %v480, %v484
  %v486 = vshrl.u32 %v444, 16
  %v488 = vshll.u32 %v444, 16
  %v490 = vrot.slane %v488, 1
  %v491 = vor.u32 %v486, %v490
  %v492 = vshrl.u32 %v446, 16
  %v494 = vshll.u32 %v446, 16
  %v496 = vrot.slane %v494, 1
  %v497 = vor.u32 %v492, %v496
  %v498 = vshrl.u32 %v448, 16
  %v500 = vshll.u32 %v448, 16
  %v502 = vrot.slane %v500, 1
  %v503 = vor.u32 %v498, %v502
  %v504 = vshrl.u32 %v450, 16
  %v506 = vshll.u32 %v450, 16
  %v508 = vrot.slane %v506, 1
  %v509 = vor.u32 %v504, %v508
  %v510 = vshrl.u32 %v452, 16
  %v512 = vshll.u32 %v452, 16
  %v514 = vrot.slane %v512, 1
  %v515 = vor.u32 %v510, %v514
  %v516 = vshrl.u32 %v454, 16
  %v518 = vshll.u32 %v454, 16
  %v520 = vrot.slane %v518, 1
  %v521 = vor.u32 %v516, %v520
  %v522 = vshrl.u32 %v456, 16
  %v524 = vshll.u32 %v456, 16
  %v526 = vrot.slane %v524, 1
  %v527 = vor.u32 %v522, %v526
  %v528 = vshrl.u32 %v458, 16
  %v530 = vshll.u32 %v458, 16
  %v532 = vrot.slane %v530, 1
  %v533 = vor.u32 %v528, %v532
  %v534 = vshrl.u32 %v460, 16
  %v536 = vshll.u32 %v460, 16
  %v538 = vrot.slane %v536, 1
  %v539 = vor.u32 %v534, %v538
  %v540 = vshrl.u32 %v462, 16
  %v542 = vshll.u32 %v462, 16
  %v544 = vrot.slane %v542, 1
  %v545 = vor.u32 %v540, %v544
  %v546 = vshrl.u32 %v464, 16
  %v548 = vshll.u32 %v464, 16
  %v550 = vrot.slane %v548, 1
  %v551 = vor.u32 %v546, %v550
  %v552 = vshrl.u32 %v466, 16
  %v554 = vshll.u32 %v466, 16
  %v556 = vrot.slane %v554, 1
  %v557 = vor.u32 %v552, %v556
  %v558 = vshrl.u32 %v467, 16
  %v560 = vshll.u32 %v467, 16
  %v562 = vrot.slane %v560, 1
  %v563 = vor.u32 %v558, %v562
  %564 = vrot.lane.b32.xlu0 %v473, 24
  %v565 = vpop.permute.xlu0 %564
  %566 = vrot.lane.b32.xlu0 %v479, 24
  %v567 = vpop.permute.xlu0 %566
  %568 = vrot.lane.b32.xlu0 %v485, 24
  %v569 = vpop.permute.xlu0 %568
  %570 = vrot.lane.b32.xlu0 %v491, 24
  %v571 = vpop.permute.xlu0 %570
  %572 = vrot.lane.b32.xlu0 %v497, 24
  %v573 = vpop.permute.xlu0 %572
  %574 = vrot.lane.b32.xlu0 %v503, 24
  %v575 = vpop.permute.xlu0 %574
  %576 = vrot.lane.b32.xlu0 %v509, 24
  %v577 = vpop.permute.xlu0 %576
  %578 = vrot.lane.b32.xlu0 %v515, 24
  %v579 = vpop.permute.xlu0 %578
  %580 = vrot.lane.b32.xlu0 %v521, 24
  %v581 = vpop.permute.xlu0 %580
  %582 = vrot.lane.b32.xlu0 %v527, 24
  %v583 = vpop.permute.xlu0 %582
  %584 = vrot.lane.b32.xlu0 %v533, 24
  %v585 = vpop.permute.xlu0 %584
  %586 = vrot.lane.b32.xlu0 %v539, 24
  %v587 = vpop.permute.xlu0 %586
  %588 = vrot.lane.b32.xlu0 %v545, 24
  %v589 = vpop.permute.xlu0 %588
  %590 = vrot.lane.b32.xlu0 %v551, 24
  %v591 = vpop.permute.xlu0 %590
  %592 = vrot.lane.b32.xlu0 %v557, 24
  %v593 = vpop.permute.xlu0 %592
  %594 = vrot.lane.b32.xlu0 %v563, 24
  %v595 = vpop.permute.xlu0 %594
  %v612 = vrot.slane %v438, 1
  %v613 = vrot.slane %v440, 1
  %v614 = vrot.slane %v442, 1
  %v615 = vrot.slane %v444, 1
  %v616 = vrot.slane %v446, 1
  %v617 = vrot.slane %v448, 1
  %v618 = vrot.slane %v450, 1
  %v619 = vrot.slane %v452, 1
  %v620 = vrot.slane %v454, 1
  %v621 = vrot.slane %v456, 1
  %v622 = vrot.slane %v458, 1
  %v623 = vrot.slane %v460, 1
  %v624 = vrot.slane %v462, 1
  %v625 = vrot.slane %v464, 1
  %v626 = vrot.slane %v466, 1
  %v627 = vrot.slane %v467, 1
  %628 = vrot.lane.b32.xlu0 %v612, 48
  %v629 = vpop.permute.xlu0 %628
  %630 = vrot.lane.b32.xlu0 %v613, 48
  %v631 = vpop.permute.xlu0 %630
  %632 = vrot.lane.b32.xlu0 %v614, 48
  %v633 = vpop.permute.xlu0 %632
  %634 = vrot.lane.b32.xlu0 %v615, 48
  %v635 = vpop.permute.xlu0 %634
  %636 = vrot.lane.b32.xlu0 %v616, 48
  %v637 = vpop.permute.xlu0 %636
  %638 = vrot.lane.b32.xlu0 %v617, 48
  %v639 = vpop.permute.xlu0 %638
  %640 = vrot.lane.b32.xlu0 %v618, 48
  %v641 = vpop.permute.xlu0 %640
  %642 = vrot.lane.b32.xlu0 %v619, 48
  %v643 = vpop.permute.xlu0 %642
  %644 = vrot.lane.b32.xlu0 %v620, 48
  %v645 = vpop.permute.xlu0 %644
  %646 = vrot.lane.b32.xlu0 %v621, 48
  %v647 = vpop.permute.xlu0 %646
  %648 = vrot.lane.b32.xlu0 %v622, 48
  %v649 = vpop.permute.xlu0 %648
  %650 = vrot.lane.b32.xlu0 %v623, 48
  %v651 = vpop.permute.xlu0 %650
  %652 = vrot.lane.b32.xlu0 %v624, 48
  %v653 = vpop.permute.xlu0 %652
  %654 = vrot.lane.b32.xlu0 %v625, 48
  %v655 = vpop.permute.xlu0 %654
  %656 = vrot.lane.b32.xlu0 %v626, 48
  %v657 = vpop.permute.xlu0 %656
  %658 = vrot.lane.b32.xlu0 %v627, 48
  %v659 = vpop.permute.xlu0 %658
  %vm660 = vcmask 195584
  %v662 = vsel %vm660, %v438, %v565
  %v664 = vsel %vm660, %v440, %v567
  %v666 = vsel %vm660, %v442, %v569
  %v668 = vsel %vm660, %v444, %v571
  %v670 = vsel %vm660, %v446, %v573
  %v672 = vsel %vm660, %v448, %v575
  %v674 = vsel %vm660, %v450, %v577
  %v676 = vsel %vm660, %v452, %v579
  %v678 = vsel %vm660, %v454, %v581
  %v680 = vsel %vm660, %v456, %v583
  %v682 = vsel %vm660, %v458, %v585
  %v684 = vsel %vm660, %v460, %v587
  %v686 = vsel %vm660, %v462, %v589
  %v688 = vsel %vm660, %v464, %v591
  %v690 = vsel %vm660, %v466, %v593
  %v692 = vsel %vm660, %v467, %v595
  %vm693 = vcmask 392192
  %v695 = vsel %vm693, %v662, %v629
  %v697 = vsel %vm693, %v664, %v631
  %v699 = vsel %vm693, %v666, %v633
  %v701 = vsel %vm693, %v668, %v635
  %v703 = vsel %vm693, %v670, %v637
  %v705 = vsel %vm693, %v672, %v639
  %v707 = vsel %vm693, %v674, %v641
  %v709 = vsel %vm693, %v676, %v643
  %v711 = vsel %vm693, %v678, %v645
  %v713 = vsel %vm693, %v680, %v647
  %v715 = vsel %vm693, %v682, %v649
  %v717 = vsel %vm693, %v684, %v651
  %v719 = vsel %vm693, %v686, %v653
  %v721 = vsel %vm693, %v688, %v655
  %v723 = vsel %vm693, %v690, %v657
  %v725 = vsel %vm693, %v692, %v659
  %vm726 = vcmask 588800
  %v727 = vsel %vm726, %v695, 0
  %v728 = vsel %vm726, %v697, 0
  %v729 = vsel %vm726, %v699, 0
  %v730 = vsel %vm726, %v701, 0
  %v731 = vsel %vm726, %v703, 0
  %v732 = vsel %vm726, %v705, 0
  %v733 = vsel %vm726, %v707, 0
  %v734 = vsel %vm726, %v709, 0
  %v735 = vsel %vm726, %v711, 0
  %v736 = vsel %vm726, %v713, 0
  %v737 = vsel %vm726, %v715, 0
  %v738 = vsel %vm726, %v717, 0
  %v739 = vsel %vm726, %v719, 0
  %v740 = vsel %vm726, %v721, 0
  %v741 = vsel %vm726, %v723, 0
  %v742 = vsel %vm726, %v725, 0
  %v743 = vld [vmem:[%s3] sm:$0xf]
  %v744 = vld [vmem:[%s3 + $0x4] sm:$0xf]
  %v745 = vld [vmem:[%s3 + $0x8] sm:$0xf]
  %v746 = vld [vmem:[%s3 + $0xc] sm:$0xf]
  %v747 = vld [vmem:[%s3 + $0x10] sm:$0xf]
  %v748 = vld [vmem:[%s3 + $0x14] sm:$0xf]
  %v749 = vld [vmem:[%s3 + $0x18] sm:$0xf]
  %v750 = vld [vmem:[%s3 + $0x1c] sm:$0xf]
  %v751 = vld [vmem:[%s3 + $0x20] sm:$0xf]
  %v752 = vld [vmem:[%s3 + $0x24] sm:$0xf]
  %v753 = vld [vmem:[%s3 + $0x28] sm:$0xf]
  %v754 = vld [vmem:[%s3 + $0x2c] sm:$0xf]
  %v755 = vld [vmem:[%s3 + $0x30] sm:$0xf]
  %v756 = vld [vmem:[%s3 + $0x34] sm:$0xf]
  %v757 = vld [vmem:[%s3 + $0x38] sm:$0xf]
  %v758 = vld [vmem:[%s3 + $0x3c] sm:$0xf]
  %v759 = vld [vmem:[%s4] sm:$0x1]
  %v761 = vlaneseq
  %v762 = vshrl.u32 %v761, 7
  %v763 = vsub.s32 0, %v762
  %v764 = vrot.slane %v759, %v763
  %v782 = vunpack.c.l.b16 %v727
  %v783 = vunpack.c.l.b16 %v728
  %v784 = vunpack.c.l.b16 %v729
  %v785 = vunpack.c.l.b16 %v730
  %v786 = vunpack.c.l.b16 %v731
  %v787 = vunpack.c.l.b16 %v732
  %v788 = vunpack.c.l.b16 %v733
  %v789 = vunpack.c.l.b16 %v734
  %v790 = vunpack.c.l.b16 %v735
  %v791 = vunpack.c.l.b16 %v736
  %v792 = vunpack.c.l.b16 %v737
  %v793 = vunpack.c.l.b16 %v738
  %v794 = vunpack.c.l.b16 %v739
  %v795 = vunpack.c.l.b16 %v740
  %v796 = vunpack.c.l.b16 %v741
  %v797 = vunpack.c.l.b16 %v742
  %v798 = vpack.c.b16 %v783, %v782
  %v799 = vpack.c.b16 %v785, %v784
  %v800 = vpack.c.b16 %v787, %v786
  %v801 = vpack.c.b16 %v789, %v788
  %v802 = vpack.c.b16 %v791, %v790
  %v803 = vpack.c.b16 %v793, %v792
  %v804 = vpack.c.b16 %v795, %v794
  %v805 = vpack.c.b16 %v797, %v796
  %v830 = vunpack.c.l.b16 %v743
  %v831 = vunpack.c.l.b16 %v744
  %v832 = vunpack.c.l.b16 %v745
  %v833 = vunpack.c.l.b16 %v746
  %v834 = vunpack.c.l.b16 %v747
  %v835 = vunpack.c.l.b16 %v748
  %v836 = vunpack.c.l.b16 %v749
  %v837 = vunpack.c.l.b16 %v750
  %v838 = vunpack.c.l.b16 %v751
  %v839 = vunpack.c.l.b16 %v752
  %v840 = vunpack.c.l.b16 %v753
  %v841 = vunpack.c.l.b16 %v754
  %v842 = vunpack.c.l.b16 %v755
  %v843 = vunpack.c.l.b16 %v756
  %v844 = vunpack.c.l.b16 %v757
  %v845 = vunpack.c.l.b16 %v758
  %v846 = vpack.c.b16 %v831, %v830
  %v847 = vpack.c.b16 %v833, %v832
  %v848 = vpack.c.b16 %v835, %v834
  %v849 = vpack.c.b16 %v837, %v836
  %v850 = vpack.c.b16 %v839, %v838
  %v851 = vpack.c.b16 %v841, %v840
  %v852 = vpack.c.b16 %v843, %v842
  %v853 = vpack.c.b16 %v845, %v844
  %862 = vmatprep.subr.bf16.mxu0 0
  %863 = vmatpush1.bf16.msra.mxu0 %v846
  %864 = vmatprep.subr.bf16.mxu0 0
  %865 = vmatpush1.bf16.msra.mxu0 %v847
  %866 = vmatprep.subr.bf16.mxu0 0
  %867 = vmatpush1.bf16.msra.mxu0 %v848
  %868 = vmatprep.subr.bf16.mxu0 0
  %869 = vmatpush1.bf16.msra.mxu0 %v849
  %870 = vmatprep.subr.bf16.mxu0 0
  %871 = vmatpush1.bf16.msra.mxu0 %v850
  %872 = vmatprep.subr.bf16.mxu0 0
  %873 = vmatpush1.bf16.msra.mxu0 %v851
  %874 = vmatprep.subr.bf16.mxu0 0
  %875 = vmatpush1.bf16.msra.mxu0 %v852
  %876 = vmatprep.subr.bf16.mxu0 0
  %877 = vmatpush1.bf16.msra.mxu0 %v853
  %878 = vmatprep.subr.bf16.mxu0 0
  %879 = vmatpush1.bf16.msra.mxu0 0
  %880 = vmatprep.subr.bf16.mxu0 0
  %881 = vmatpush1.bf16.msra.mxu0 0
  %882 = vmatprep.subr.bf16.mxu0 0
  %883 = vmatpush1.bf16.msra.mxu0 0
  %884 = vmatprep.subr.bf16.mxu0 0
  %885 = vmatpush1.bf16.msra.mxu0 0
  %886 = vmatprep.subr.bf16.mxu0 0
  %887 = vmatpush1.bf16.msra.mxu0 0
  %888 = vmatprep.subr.bf16.mxu0 0
  %889 = vmatpush1.bf16.msra.mxu0 0
  %890 = vmatprep.subr.bf16.mxu0 0
  %891 = vmatpush1.bf16.msra.mxu0 0
  %892 = vmatprep.subr.bf16.mxu0 0
  %893 = vmatpush1.bf16.msra.mxu0 0
  %894 = vmatprep.mubr.bf16.mxu0 0
  %895 = vmatmul.mubr.bf16.gmra.mrb[0].mxu0 %v798
  %v896 = vpop.f32.mrb[0].mxu0
  %v897 = vadd.f32 %v764, %v896
  %v898 = vpop.f32.mrb[0].mxu0
  %v899 = vpop.f32.mrb[0].mxu0
  %v900 = vadd.f32 %v764, %v899
  %v901 = vpop.f32.mrb[0].mxu0
  %902 = vmatprep.mubr.bf16.mxu0 0
  %903 = vmatmul.mubr.bf16.gmra.mrb[0].mxu0 %v799
  %v904 = vpop.f32.mrb[0].mxu0
  %v905 = vadd.f32 %v764, %v904
  %v906 = vpop.f32.mrb[0].mxu0
  %v907 = vpop.f32.mrb[0].mxu0
  %v908 = vadd.f32 %v764, %v907
  %v909 = vpop.f32.mrb[0].mxu0
  %910 = vmatprep.mubr.bf16.mxu0 0
  %911 = vmatmul.mubr.bf16.gmra.mrb[0].mxu0 %v800
  %v912 = vpop.f32.mrb[0].mxu0
  %v913 = vadd.f32 %v764, %v912
  %v914 = vpop.f32.mrb[0].mxu0
  %v915 = vpop.f32.mrb[0].mxu0
  %v916 = vadd.f32 %v764, %v915
  %v917 = vpop.f32.mrb[0].mxu0
  %918 = vmatprep.mubr.bf16.mxu0 0
  %919 = vmatmul.mubr.bf16.gmra.mrb[0].mxu0 %v801
  %v920 = vpop.f32.mrb[0].mxu0
  %v921 = vadd.f32 %v764, %v920
  %v922 = vpop.f32.mrb[0].mxu0
  %v923 = vpop.f32.mrb[0].mxu0
  %v924 = vadd.f32 %v764, %v923
  %v925 = vpop.f32.mrb[0].mxu0
  %926 = vmatprep.mubr.bf16.mxu0 0
  %927 = vmatmul.mubr.bf16.gmra.mrb[0].mxu0 %v802
  %v928 = vpop.f32.mrb[0].mxu0
  %v929 = vadd.f32 %v764, %v928
  %v930 = vpop.f32.mrb[0].mxu0
  %v931 = vpop.f32.mrb[0].mxu0
  %v932 = vadd.f32 %v764, %v931
  %v933 = vpop.f32.mrb[0].mxu0
  %934 = vmatprep.mubr.bf16.mxu0 0
  %935 = vmatmul.mubr.bf16.gmra.mrb[0].mxu0 %v803
  %v936 = vpop.f32.mrb[0].mxu0
  %v937 = vadd.f32 %v764, %v936
  %v938 = vpop.f32.mrb[0].mxu0
  %v939 = vpop.f32.mrb[0].mxu0
  %v940 = vadd.f32 %v764, %v939
  %v941 = vpop.f32.mrb[0].mxu0
  %942 = vmatprep.mubr.bf16.mxu0 0
  %943 = vmatmul.mubr.bf16.gmra.mrb[0].mxu0 %v804
  %v944 = vpop.f32.mrb[0].mxu0
  %v945 = vadd.f32 %v764, %v944
  %v946 = vpop.f32.mrb[0].mxu0
  %v947 = vpop.f32.mrb[0].mxu0
  %v948 = vadd.f32 %v764, %v947
  %v949 = vpop.f32.mrb[0].mxu0
  %950 = vmatprep.mubr.bf16.mxu0 0
  %951 = vmatmul.mubr.bf16.gmra.mrb[0].mxu0 %v805
  %v952 = vpop.f32.mrb[0].mxu0
  %v953 = vadd.f32 %v764, %v952
  %v954 = vpop.f32.mrb[0].mxu0
  %v955 = vpop.f32.mrb[0].mxu0
  %v956 = vadd.f32 %v764, %v955
  %v957 = vpop.f32.mrb[0].mxu0
  %958 = vdwg.mxu0
  %v959 = vadd.f32 %v897, %v900
  %v960 = vadd.f32 %v959, %v905
  %v961 = vadd.f32 %v960, %v908
  %v962 = vadd.f32 %v961, %v913
  %v963 = vadd.f32 %v962, %v916
  %v964 = vadd.f32 %v963, %v921
  %v965 = vadd.f32 %v964, %v924
  %v966 = vadd.f32 %v965, %v929
  %v967 = vadd.f32 %v966, %v932
  %v968 = vadd.f32 %v967, %v937
  %v969 = vadd.f32 %v968, %v940
  %v970 = vadd.f32 %v969, %v945
  %v971 = vadd.f32 %v970, %v948
  %v972 = vadd.f32 %v971, %v953
  %v973 = vadd.f32 %v972, %v956
  %v974 = vrot.slane %v973, 4
  %v975 = vadd.f32 %v973, %v974
  %v976 = vrot.slane %v975, 2
  %v977 = vadd.f32 %v975, %v976
  %v978 = vrot.slane %v977, 1
  %v979 = vadd.f32 %v977, %v978
  %v980 = vrcp.pop 128.0
  %v981 = vmul.f32 %v979, %v980
  %v982 = vsub.f32 %v897, %v981
  %v983 = vsub.f32 %v900, %v981
  %v984 = vsub.f32 %v905, %v981
  %v985 = vsub.f32 %v908, %v981
  %v986 = vsub.f32 %v913, %v981
  %v987 = vsub.f32 %v916, %v981
  %v988 = vsub.f32 %v921, %v981
  %v989 = vsub.f32 %v924, %v981
  %v990 = vsub.f32 %v929, %v981
  %v991 = vsub.f32 %v932, %v981
  %v992 = vsub.f32 %v937, %v981
  %v993 = vsub.f32 %v940, %v981
  %v994 = vsub.f32 %v945, %v981
  %v995 = vsub.f32 %v948, %v981
  %v996 = vsub.f32 %v953, %v981
  %v997 = vsub.f32 %v956, %v981
  %v998 = vmul.f32 %v982, %v982
  %v999 = vmul.f32 %v983, %v983
  %v1000 = vmul.f32 %v984, %v984
  %v1001 = vmul.f32 %v985, %v985
  %v1002 = vmul.f32 %v986, %v986
  %v1003 = vmul.f32 %v987, %v987
  %v1004 = vmul.f32 %v988, %v988
  %v1005 = vmul.f32 %v989, %v989
  %v1006 = vmul.f32 %v990, %v990
  %v1007 = vmul.f32 %v991, %v991
  %v1008 = vmul.f32 %v992, %v992
  %v1009 = vmul.f32 %v993, %v993
  %v1010 = vmul.f32 %v994, %v994
  %v1011 = vmul.f32 %v995, %v995
  %v1012 = vmul.f32 %v996, %v996
  %v1013 = vmul.f32 %v997, %v997
  %v1014 = vadd.f32 %v998, %v999
  %v1015 = vadd.f32 %v1014, %v1000
  %v1016 = vadd.f32 %v1015, %v1001
  %v1017 = vadd.f32 %v1016, %v1002
  %v1018 = vadd.f32 %v1017, %v1003
  %v1019 = vadd.f32 %v1018, %v1004
  %v1020 = vadd.f32 %v1019, %v1005
  %v1021 = vadd.f32 %v1020, %v1006
  %v1022 = vadd.f32 %v1021, %v1007
  %v1023 = vadd.f32 %v1022, %v1008
  %v1024 = vadd.f32 %v1023, %v1009
  %v1025 = vadd.f32 %v1024, %v1010
  %v1026 = vadd.f32 %v1025, %v1011
  %v1027 = vadd.f32 %v1026, %v1012
  %v1028 = vadd.f32 %v1027, %v1013
  %v1029 = vrot.slane %v1028, 4
  %v1030 = vadd.f32 %v1028, %v1029
  %v1031 = vrot.slane %v1030, 2
  %v1032 = vadd.f32 %v1030, %v1031
  %v1033 = vrot.slane %v1032, 1
  %v1034 = vadd.f32 %v1032, %v1033
  %vm1035 = vcmask 1040384
  %v1036 = vsel %vm1035, %v981, %v1034
  %1037 = vst [vmem:[%s6] sm:$0x3] %v1036
  %v1038 = vpack.c.bf16 %v897, %v897
  %v1039 = vpack.c.bf16 %v900, %v900
  %v1040 = vpack.c.bf16 %v905, %v905
  %v1041 = vpack.c.bf16 %v908, %v908
  %v1042 = vpack.c.bf16 %v913, %v913
  %v1043 = vpack.c.bf16 %v916, %v916
  %v1044 = vpack.c.bf16 %v921, %v921
  %v1045 = vpack.c.bf16 %v924, %v924
  %v1046 = vpack.c.bf16 %v929, %v929
  %v1047 = vpack.c.bf16 %v932, %v932
  %v1048 = vpack.c.bf16 %v937, %v937
  %v1049 = vpack.c.bf16 %v940, %v940
  %v1050 = vpack.c.bf16 %v945, %v945
  %v1051 = vpack.c.bf16 %v948, %v948
  %v1052 = vpack.c.bf16 %v953, %v953
  %v1053 = vpack.c.bf16 %v956, %v956
  %vm1054 = vcmask 60416
  %1055 = vst.msk [vmem:[%s5] sm:$0xf] %vm1054, %v1038
  %1056 = vst.msk [vmem:[%s5 + $0x4] sm:$0xf] %vm1054, %v1039
  %1057 = vst.msk [vmem:[%s5 + $0x8] sm:$0xf] %vm1054, %v1040
  %1058 = vst.msk [vmem:[%s5 + $0xc] sm:$0xf] %vm1054, %v1041
  %1059 = vst.msk [vmem:[%s5 + $0x10] sm:$0xf] %vm1054, %v1042
  %1060 = vst.msk [vmem:[%s5 + $0x14] sm:$0xf] %vm1054, %v1043
  %1061 = vst.msk [vmem:[%s5 + $0x18] sm:$0xf] %vm1054, %v1044
  %1062 = vst.msk [vmem:[%s5 + $0x1c] sm:$0xf] %vm1054, %v1045
  %1063 = vst.msk [vmem:[%s5 + $0x20] sm:$0xf] %vm1054, %v1046
  %1064 = vst.msk [vmem:[%s5 + $0x24] sm:$0xf] %vm1054, %v1047
  %1065 = vst.msk [vmem:[%s5 + $0x28] sm:$0xf] %vm1054, %v1048
  %1066 = vst.msk [vmem:[%s5 + $0x2c] sm:$0xf] %vm1054, %v1049
  %1067 = vst.msk [vmem:[%s5 + $0x30] sm:$0xf] %vm1054, %v1050
  %1068 = vst.msk [vmem:[%s5 + $0x34] sm:$0xf] %vm1054, %v1051
  %1069 = vst.msk [vmem:[%s5 + $0x38] sm:$0xf] %vm1054, %v1052
  %1070 = vst.msk [vmem:[%s5 + $0x3c] sm:$0xf] %vm1054, %v1053
  // Predicated region
  $region22: #{down_forward.3} parent=0 // pred_check
    _
  $region23: #{down_forward.3} parent=0 // pred_check_branch
    %1072 = sbr.rel (0) target = $region25
  $region24: #{down_forward.3} parent=0 // pred_region
    _
  $region25: #{down_forward.3} parent=0 // pred_fallthru
    _
  // Predicated region
  $region26: #{down_forward.3} parent=0 // pred_check
    _
  $region27: #{down_forward.3} parent=0 // pred_check_branch
    %1074 = sbr.rel (0) target = $region29
  $region28: #{down_forward.3} parent=0 // pred_region
    _
  $region29: #{down_forward.3} parent=0 // pred_fallthru
    _
  // Predicated region
  $region30: #{down_forward.3} parent=0 // pred_check
    _
  $region31: #{down_forward.3} parent=0 // pred_check_branch
    %1076 = sbr.rel (0) target = $region33
  $region32: #{down_forward.3} parent=0 // pred_region
    _
  $region33: #{down_forward.3} parent=0 // pred_fallthru
    _
  // Predicated region
  $region34: #{down_forward.3} parent=0 // pred_check
    _
  $region35: #{down_forward.3} parent=0 // pred_check_branch
    %1078 = sbr.rel (0) target = $region37
  $region36: #{down_forward.3} parent=0 // pred_region
    _
  $region37: #{down_forward.3} parent=0 // pred_fallthru
    _

</llo_original>
